<compile_context>
chip_gen: v5e
topology: v5e:2x2
jax: 0.10.0
libtpu: 0.0.40
codegen_flags: <defaults>
</compile_context>

<pallas_src>
import functools

import jax
import jax.numpy as jnp
from jax import lax
from jax.experimental import pallas as pl
from jax.experimental.pallas import tpu as pltpu

_MIB = 1024 * 1024


# ---------------------------------------------------------------------------
# Generation-aware hardware queries.
# ---------------------------------------------------------------------------
def _device_kind() -> str:
    try:
        return jax.devices()[0].device_kind.lower()
    except Exception:
        return ""


def _vmem_capacity_bytes() -> int:
    try:
        cap = int(getattr(pltpu.get_tpu_info(), "vmem_capacity_bytes", 0))
        if cap > 0:
            return cap
    except Exception:
        pass
    # v7x has 64 MiB VMEM per TensorCore; v5e/v6e have 128 MiB.
    return 64 * _MIB if "v7" in _device_kind() else 128 * _MIB


def _vmem_budget_bytes() -> int:
    cap = _vmem_capacity_bytes()
    # ~105 MiB on 128 MiB parts (v5e/v6e), ~52 MiB on 64 MiB parts (v7x).
    return min(int(cap * 0.82), cap - 10 * _MIB)


def _pick_cout_tile(cout: int) -> int:
    kind = _device_kind()
    is_v5e = ("v5" in kind) and ("lite" in kind or "v5e" in kind)
    # v5e MXU is 128-wide -> TC=128 loses nothing and halves the f32 slabs.
    # v6e/v7x MXU is 256-wide -> keep TC=256 (and 8 grid steps for megacore).
    prefer = (128, 256) if is_v5e else (256, 128)
    for tc in prefer:
        if cout % tc == 0:
            return tc
    return cout  # tiny / irregular toy shapes: single full-width tile


def _pick_m_tile(m_rows: int, max_tm: int) -> int:
    """Largest TM <= max_tm with TM % 8 == 0 and m_rows % TM == 0."""
    if m_rows <= max_tm:
        return m_rows
    tm = (max_tm // 8) * 8
    while tm >= 8:
        if m_rows % tm == 0:
            return tm
        tm -= 8
    return m_rows  # no divisible M tile found: fall back to a single M block


# ---------------------------------------------------------------------------
# Kernels.
# ---------------------------------------------------------------------------
def _sum_and_sumsq(y, chunk=1024):
    """Per-channel sum / sum-of-squares without a live full-size y*y temp."""
    m, n = y.shape
    if m <= chunk:
        return (jnp.sum(y, axis=0, keepdims=True),
                jnp.sum(y * y, axis=0, keepdims=True))
    s = jnp.zeros((1, n), jnp.float32)
    sq = jnp.zeros((1, n), jnp.float32)
    for start in range(0, m, chunk):
        blk = y[start:min(start + chunk, m)]          # static slice
        s = s + jnp.sum(blk, axis=0, keepdims=True)
        sq = sq + jnp.sum(blk * blk, axis=0, keepdims=True)
    return s, sq


def _fused_kernel(x_ref, w_ref, gamma_ref, beta_ref, res_ref, o_ref, *, eps):
    """Single-pass conv(1x1) + training-mode BN + residual for one Cout tile.

    The whole M = N*Ho*Wo row dimension is one block, so the batch statistics
    are exact whole-batch statistics.
    """
    y = jnp.dot(x_ref[...], w_ref[...], preferred_element_type=jnp.float32)  # (M, TC)

    inv_m = jnp.float32(1.0 / y.shape[0])
    s, sq = _sum_and_sumsq(y)
    mean = s * inv_m
    var = sq * inv_m - mean * mean            # biased variance (PyTorch training BN)
    inv_std = lax.rsqrt(var + eps)

    # Per-channel scale/shift -> a single VPU pass over the (M, TC) tile.
    scale = inv_std * gamma_ref[...]
    shift = beta_ref[...] - mean * scale
    o_ref[...] = (y * scale + shift + res_ref[...]).astype(o_ref.dtype)


def _pass1_kernel(x_ref, w_ref, y_ref, sum_ref, sq_ref):
    """M-tiled pass 1: conv matmul + per-channel sum / sumsq accumulation."""
    y = jnp.dot(x_ref[...], w_ref[...], preferred_element_type=jnp.float32)
    y_ref[...] = y.astype(y_ref.dtype)

    s, sq = _sum_and_sumsq(y)

    @pl.when(pl.program_id(1) == 0)
    def _():
        sum_ref[...] = jnp.zeros_like(sum_ref)
        sq_ref[...] = jnp.zeros_like(sq_ref)

    sum_ref[...] += s
    sq_ref[...] += sq


def _pass2_kernel(sum_ref, sq_ref, gamma_ref, beta_ref, y_ref, res_ref, o_ref, *,
                  eps, inv_m):
    """M-tiled pass 2: normalize with whole-batch stats + residual add."""
    mean = sum_ref[...] * inv_m
    var = sq_ref[...] * inv_m - mean * mean
    inv_std = lax.rsqrt(var + eps)
    scale = inv_std * gamma_ref[...]
    shift = beta_ref[...] - mean * scale
    o_ref[...] = (y_ref[...].astype(jnp.float32) * scale + shift
                  + res_ref[...]).astype(o_ref.dtype)


# ---------------------------------------------------------------------------
# pallas_call wrappers.
# ---------------------------------------------------------------------------
def _fused_vmem_estimate(m_rows, cin, tc, single_buffer_x, chunk=1024):
    bytes_x = m_rows * cin * 2 * (1 if single_buffer_x else 2)
    per_tile = cin * tc * 2 + m_rows * tc * 4 + m_rows * tc * 4 + 2 * tc * 4
    bytes_tiles = 2 * per_tile                         # double-buffered w/res/out/params
    bytes_tmp = 2 * m_rows * tc * 4 + min(chunk, m_rows) * tc * 4  # y, out expr, y*y chunk
    return bytes_x + bytes_tiles + bytes_tmp


def _fused_call(x_rows, w_mat, gamma2, beta2, res_rows, *, eps, tc, budget,
                single_buffer_x):
    m_rows, cin = x_rows.shape
    cout = w_mat.shape[1]
    n_tiles = cout // tc

    est = _fused_vmem_estimate(m_rows, cin, tc, single_buffer_x)
    vmem_limit = int(min(max(int(est * 1.25), 32 * _MIB), budget))

    x_spec_kwargs = {}
    if single_buffer_x:
        # Constant index_map -> the resident x block needs only one buffer.
        x_spec_kwargs["pipeline_mode"] = pl.Buffered(1)

    return pl.pallas_call(
        functools.partial(_fused_kernel, eps=eps),
        out_shape=jax.ShapeDtypeStruct((m_rows, cout), jnp.float32),
        grid_spec=pl.GridSpec(
            grid=(n_tiles,),
            in_specs=[
                pl.BlockSpec((m_rows, cin), lambda j: (0, 0), **x_spec_kwargs),
                pl.BlockSpec((cin, tc), lambda j: (0, j)),       # weight slice
                pl.BlockSpec((1, tc), lambda j: (0, j)),         # gamma slice
                pl.BlockSpec((1, tc), lambda j: (0, j)),         # beta slice
                pl.BlockSpec((m_rows, tc), lambda j: (0, j)),    # residual slice
            ],
            out_specs=pl.BlockSpec((m_rows, tc), lambda j: (0, j)),
        ),
        input_output_aliases={4: 0},   # reuse the residual slab as the output
        compiler_params=pltpu.CompilerParams(
            dimension_semantics=("parallel",),
            vmem_limit_bytes=vmem_limit,
        ),
    )(x_rows, w_mat, gamma2, beta2, res_rows)


def _two_pass_call(x_rows, w_mat, gamma2, beta2, res_rows, *, eps, tc, tm, budget,
                   y_dtype=jnp.bfloat16):
    m_rows, cin = x_rows.shape
    cout = w_mat.shape[1]
    n_ct = cout // tc
    n_mt = m_rows // tm
    yb = jnp.dtype(y_dtype).itemsize

    # Pass 1: y = x @ w per (m, cout) tile + per-channel sum/sumsq accumulation
    # along the "arbitrary" M axis (stats outputs stay resident across it).
    est1 = 2 * (tm * cin * 2 + cin * tc * 2 + tm * tc * yb + 2 * tc * 4) + 2 * tm * tc * 4
    vmem1 = int(min(max(int(est1 * 1.25), 32 * _MIB), budget))
    y_rows, ch_sum, ch_sq = pl.pallas_call(
        _pass1_kernel,
        out_shape=(
            jax.ShapeDtypeStruct((m_rows, cout), y_dtype),   # bf16 intermediate halves HBM
            jax.ShapeDtypeStruct((1, cout), jnp.float32),
            jax.ShapeDtypeStruct((1, cout), jnp.float32),
        ),
        grid_spec=pl.GridSpec(
            grid=(n_ct, n_mt),
            in_specs=[
                pl.BlockSpec((tm, cin), lambda j, i: (i, 0)),
                pl.BlockSpec((cin, tc), lambda j, i: (0, j)),   # resident per cout tile
            ],
            out_specs=(
                pl.BlockSpec((tm, tc), lambda j, i: (i, j)),
                pl.BlockSpec((1, tc), lambda j, i: (0, j)),
                pl.BlockSpec((1, tc), lambda j, i: (0, j)),
            ),
        ),
        compiler_params=pltpu.CompilerParams(
            dimension_semantics=("parallel", "arbitrary"),
            vmem_limit_bytes=vmem1,
        ),
    )(x_rows, w_mat)

    # Pass 2: elementwise normalize + residual add (whole-batch stats).
    est2 = 2 * (4 * tc * 4 + tm * tc * (yb + 8)) + tm * tc * 4
    vmem2 = int(min(max(int(est2 * 1.25), 32 * _MIB), budget))
    return pl.pallas_call(
        functools.partial(_pass2_kernel, eps=eps, inv_m=float(1.0 / m_rows)),
        out_shape=jax.ShapeDtypeStruct((m_rows, cout), jnp.float32),
        grid_spec=pl.GridSpec(
            grid=(n_ct, n_mt),
            in_specs=[
                pl.BlockSpec((1, tc), lambda j, i: (0, j)),
                pl.BlockSpec((1, tc), lambda j, i: (0, j)),
                pl.BlockSpec((1, tc), lambda j, i: (0, j)),
                pl.BlockSpec((1, tc), lambda j, i: (0, j)),
                pl.BlockSpec((tm, tc), lambda j, i: (i, j)),
                pl.BlockSpec((tm, tc), lambda j, i: (i, j)),
            ],
            out_specs=pl.BlockSpec((tm, tc), lambda j, i: (i, j)),
        ),
        input_output_aliases={5: 0},   # residual slab -> output
        compiler_params=pltpu.CompilerParams(
            dimension_semantics=("parallel", "parallel"),
            vmem_limit_bytes=vmem2,
        ),
    )(ch_sum, ch_sq, gamma2, beta2, y_rows, res_rows)


def conv_bn_add_rows(x_rows, res_rows, w_mat, gamma, beta, *, eps=1e-5,
                     force_two_pass=False, max_m_tile=None):
    """Channels-last core: rows(M,Cin) @ W(Cin,Cout) -> BN(batch stats) -> + res.

    NHWC-resident graphs should call this directly to avoid the NCHW<->rows
    layout round-trips of the NCHW wrapper.
    """
    m_rows, cin = x_rows.shape
    cout = w_mat.shape[1]

    x_rows = x_rows.astype(jnp.bfloat16)
    w_mat = w_mat.astype(jnp.bfloat16)
    res_rows = res_rows.astype(jnp.float32)
    gamma2 = gamma.reshape(1, cout).astype(jnp.float32)
    beta2 = beta.reshape(1, cout).astype(jnp.float32)

    tc = _pick_cout_tile(cout)
    budget = _vmem_budget_bytes()

    fits_fused = _fused_vmem_estimate(m_rows, cin, tc, True) <= budget
    if fits_fused and not force_two_pass:
        try:
            return _fused_call(x_rows, w_mat, gamma2, beta2, res_rows,
                               eps=eps, tc=tc, budget=budget, single_buffer_x=True)
        except Exception:
            # pl.Buffered(1) unsupported on this jax build -> default buffering.
            return _fused_call(x_rows, w_mat, gamma2, beta2, res_rows,
                               eps=eps, tc=tc, budget=budget, single_buffer_x=False)

    # M-tiled two-pass fallback (preserves whole-batch BN statistics).
    yb = 2  # bf16 intermediate y
    per_row = 2 * (cin * 2) + 2 * tc * (yb + 4 + 4) + 2 * tc * 4  # rough bytes / M-row
    max_tm = max(int((budget * 0.6) // per_row), 8)
    if max_m_tile is not None:
        max_tm = min(max_tm, int(max_m_tile))
    tm = _pick_m_tile(m_rows, max_tm)
    return _two_pass_call(x_rows, w_mat, gamma2, beta2, res_rows,
                          eps=eps, tc=tc, tm=tm, budget=budget)


def conv_bn_add(x480, x488, weight, gamma, beta, *, stride=2, eps=1e-5,
                force_two_pass=False, max_m_tile=None):
    """NCHW wrapper matching the PyTorch module interface."""
    n, cin, h, w = x480.shape
    cout = weight.shape[0]
    ho, wo = (h + stride - 1) // stride, (w + stride - 1) // stride
    assert x488.shape == (n, cout, ho, wo)
    m_rows = n * ho * wo

    # Glue: strided spatial gather for the 1x1 stride-2 conv fused with the
    # NCHW -> rows transpose + bf16 cast.
    x_rows = (jnp.transpose(x480[:, :, ::stride, ::stride], (0, 2, 3, 1))
              .reshape(m_rows, cin))
    res_rows = jnp.transpose(x488, (0, 2, 3, 1)).reshape(m_rows, cout)
    w_mat = weight.reshape(cout, cin).T

    out_rows = conv_bn_add_rows(x_rows, res_rows, w_mat, gamma, beta, eps=eps,
                                force_two_pass=force_two_pass, max_m_tile=max_m_tile)

    # TODO(synk): keep the surrounding graph NHWC (use conv_bn_add_rows directly)
    # so both layout transposes -- which dominate HBM traffic at real shapes --
    # disappear; here we must return NCHW to match the PyTorch module.
    return jnp.transpose(out_rows.reshape(n, ho, wo, cout), (0, 3, 1, 2))


def _reference(x480, x488, weight, gamma, beta, *, stride=2, eps=1e-5):
    """Pure-JAX reference (training-mode BN).  Matmul inputs are bf16-rounded
    exactly like the kernel so the comparison tolerance can be tight."""
    x_s = x480[:, :, ::stride, ::stride].astype(jnp.bfloat16).astype(jnp.float32)
    w = (weight.reshape(weight.shape[0], weight.shape[1])
         .astype(jnp.bfloat16).astype(jnp.float32))
    y = jnp.einsum("nchw,oc->nohw", x_s, w, precision=lax.Precision.HIGHEST)
    mean = jnp.mean(y, axis=(0, 2, 3), keepdims=True)
    var = jnp.mean((y - mean) ** 2, axis=(0, 2, 3), keepdims=True)
    y_hat = (y - mean) * lax.rsqrt(var + eps)
    y_hat = y_hat * gamma.reshape(1, -1, 1, 1) + beta.reshape(1, -1, 1, 1)
    return x488 + y_hat


if __name__ == "__main__":
    # Small shapes consistent with the module (1x1 stride-2 conv, Cout = 2*Cin,
    # residual at the strided resolution).
    N, CIN, COUT, H, W = 2, 128, 512, 16, 16
    STRIDE = 2
    HO, WO = H // STRIDE, W // STRIDE

    key = jax.random.PRNGKey(0)
    k1, k2, k3 = jax.random.split(key, 3)
    x480 = jax.random.normal(k1, (N, CIN, H, W), dtype=jnp.float32)
    x488 = jax.random.normal(k2, (N, COUT, HO, WO), dtype=jnp.float32)
    weight = (jax.random.normal(k3, (COUT, CIN, 1, 1), dtype=jnp.float32)
              * (1.0 / jnp.sqrt(CIN)))
    gamma = jnp.ones((COUT,), dtype=jnp.float32)   # BatchNorm affine defaults
    beta = jnp.zeros((COUT,), dtype=jnp.float32)

    ref = jax.block_until_ready(
        _reference(x480, x488, weight, gamma, beta, stride=STRIDE, eps=1e-5))

    # Fused single-pass path (used at the module's real shapes on v5e/v6e and
    # small-batch v7x).
    out = jax.block_until_ready(
        conv_bn_add(x480, x488, weight, gamma, beta, stride=STRIDE, eps=1e-5))
    assert out.shape == (N, COUT, HO, WO)
    err = float(jnp.max(jnp.abs(out - ref)))
    assert jnp.allclose(out, ref, atol=2e-2, rtol=2e-2), err

    # M-tiled two-pass fallback (triggered when the fused footprint exceeds the
    # VMEM budget, e.g. large batch on v7x); forced here to verify that the
    # whole-batch BN statistics are preserved under M tiling.
    out2 = jax.block_until_ready(
        conv_bn_add(x480, x488, weight, gamma, beta, stride=STRIDE, eps=1e-5,
                    force_two_pass=True, max_m_tile=64))
    err2 = float(jnp.max(jnp.abs(out2 - ref)))
    assert jnp.allclose(out2, ref, atol=5e-2, rtol=5e-2), err2

    print("KERNEL_OK")
</pallas_src>

<mosaic_0001>
module attributes {stable_mosaic.version = 11 : i64} {
  func.func @_fused_kernel(%arg0: i32, %arg1: memref<128x128xbf16, #tpu.memory_space<vmem>>, %arg2: memref<128x256xbf16, #tpu.memory_space<vmem>>, %arg3: memref<1x256xf32, #tpu.memory_space<vmem>>, %arg4: memref<1x256xf32, #tpu.memory_space<vmem>>, %arg5: memref<128x256xf32, #tpu.memory_space<vmem>>, %arg6: memref<128x256xf32, #tpu.memory_space<vmem>>) attributes {dimension_semantics = [#tpu.dimension_semantics<parallel>], iteration_bounds = array<i64: 2>, scalar_prefetch = 0 : i64, scratch_operands = 0 : i64, tpu.core_type = #tpu.core_type<tc>, window_params = [{pipeline_mode = #tpu.pipeline_mode<synchronous>, transform_indices = @transform_0, window_bounds = array<i64: 128, 128>}, {transform_indices = @transform_1, window_bounds = array<i64: 128, 256>}, {transform_indices = @transform_2, window_bounds = array<i64: 1, 256>}, {transform_indices = @transform_3, window_bounds = array<i64: 1, 256>}, {transform_indices = @transform_4, window_bounds = array<i64: 128, 256>}, {transform_indices = @transform_5, window_bounds = array<i64: 128, 256>}]} {
    %c0 = arith.constant 0 : index
    %c0_0 = arith.constant 0 : index
    %0 = vector.load %arg1[%c0, %c0_0] : memref<128x128xbf16, #tpu.memory_space<vmem>>, vector<128x128xbf16>
    %c0_1 = arith.constant 0 : index
    %c0_2 = arith.constant 0 : index
    %1 = vector.load %arg2[%c0_1, %c0_2] : memref<128x256xbf16, #tpu.memory_space<vmem>>, vector<128x256xbf16>
    %cst = arith.constant dense<0.000000e+00> : vector<128x256xf32>
    %2 = tpu.matmul %0, %1, %cst {dimension_numbers = #tpu.dot_dimension_numbers<[1], [0], [0], [1], [0, 0, 1, 1], [], []>} : vector<128x128xbf16>, vector<128x256xbf16>, vector<128x256xf32> -> vector<128x256xf32>
    %cst_3 = arith.constant dense<0.000000e+00> : vector<256xf32>
    %3 = vector.multi_reduction <add>, %2, %cst_3 [0] : vector<128x256xf32> to vector<256xf32>
    %4 = vector.shape_cast %3 : vector<256xf32> to vector<1x256xf32>
    %5 = arith.mulf %2, %2 : vector<128x256xf32>
    %cst_4 = arith.constant dense<0.000000e+00> : vector<256xf32>
    %6 = vector.multi_reduction <add>, %5, %cst_4 [0] : vector<128x256xf32> to vector<256xf32>
    %7 = vector.shape_cast %6 : vector<256xf32> to vector<1x256xf32>
    %cst_5 = arith.constant 7.812500e-03 : f32
    %8 = vector.broadcast %cst_5 : f32 to vector<1x256xf32>
    %9 = arith.mulf %4, %8 : vector<1x256xf32>
    %cst_6 = arith.constant 7.812500e-03 : f32
    %10 = vector.broadcast %cst_6 : f32 to vector<1x256xf32>
    %11 = arith.mulf %7, %10 : vector<1x256xf32>
    %12 = arith.mulf %9, %9 : vector<1x256xf32>
    %13 = arith.subf %11, %12 : vector<1x256xf32>
    %cst_7 = arith.constant 9.99999974E-6 : f32
    %14 = vector.broadcast %cst_7 : f32 to vector<1x256xf32>
    %15 = arith.addf %13, %14 : vector<1x256xf32>
    %16 = math.rsqrt %15 : vector<1x256xf32>
    %c0_8 = arith.constant 0 : index
    %c0_9 = arith.constant 0 : index
    %17 = vector.load %arg3[%c0_8, %c0_9] : memref<1x256xf32, #tpu.memory_space<vmem>>, vector<1x256xf32>
    %18 = arith.mulf %16, %17 : vector<1x256xf32>
    %c0_10 = arith.constant 0 : index
    %c0_11 = arith.constant 0 : index
    %19 = vector.load %arg4[%c0_10, %c0_11] : memref<1x256xf32, #tpu.memory_space<vmem>>, vector<1x256xf32>
    %20 = arith.mulf %9, %18 : vector<1x256xf32>
    %21 = arith.subf %19, %20 : vector<1x256xf32>
    %22 = vector.broadcast %18 : vector<1x256xf32> to vector<128x256xf32>
    %23 = arith.mulf %2, %22 : vector<128x256xf32>
    %24 = vector.broadcast %21 : vector<1x256xf32> to vector<128x256xf32>
    %25 = arith.addf %23, %24 : vector<128x256xf32>
    %c0_12 = arith.constant 0 : index
    %c0_13 = arith.constant 0 : index
    %26 = vector.load %arg5[%c0_12, %c0_13] : memref<128x256xf32, #tpu.memory_space<vmem>>, vector<128x256xf32>
    %27 = arith.addf %25, %26 : vector<128x256xf32>
    %c0_14 = arith.constant 0 : index
    %c0_15 = arith.constant 0 : index
    %28 = vector.load %arg6[%c0_14, %c0_15] : memref<128x256xf32, #tpu.memory_space<vmem>>, vector<128x256xf32>
    tpu.vector_store %arg6[%c0_14, %c0_15], %27 {strides = array<i32>} : memref<128x256xf32, #tpu.memory_space<vmem>>, vector<128x256xf32>,
    return
  }
  func.func @transform_0(%arg0: i32) -> (i32, i32) {
    %c0_i32 = arith.constant 0 : i32
    %c0_i32_0 = arith.constant 0 : i32
    %c0_i32_1 = arith.constant 0 : i32
    return %c0_i32, %c0_i32_0 : i32, i32
  }
  func.func @transform_1(%arg0: i32) -> (i32, i32) {
    %c0_i32 = arith.constant 0 : i32
    %c0_i32_0 = arith.constant 0 : i32
    return %c0_i32, %arg0 : i32, i32
  }
  func.func @transform_2(%arg0: i32) -> (i32, i32) {
    %c0_i32 = arith.constant 0 : i32
    %c0_i32_0 = arith.constant 0 : i32
    return %c0_i32, %arg0 : i32, i32
  }
  func.func @transform_3(%arg0: i32) -> (i32, i32) {
    %c0_i32 = arith.constant 0 : i32
    %c0_i32_0 = arith.constant 0 : i32
    return %c0_i32, %arg0 : i32, i32
  }
  func.func @transform_4(%arg0: i32) -> (i32, i32) {
    %c0_i32 = arith.constant 0 : i32
    %c0_i32_0 = arith.constant 0 : i32
    return %c0_i32, %arg0 : i32, i32
  }
  func.func @transform_5(%arg0: i32) -> (i32, i32) {
    %c0_i32 = arith.constant 0 : i32
    %c0_i32_0 = arith.constant 0 : i32
    return %c0_i32, %arg0 : i32, i32
  }
}

module attributes {stable_mosaic.version = 11 : i64} {
  func.func @_fused_kernel(%arg0: i32, %arg1: memref<128x128xbf16, #tpu.memory_space<vmem>>, %arg2: memref<128x256xbf16, #tpu.memory_space<vmem>>, %arg3: memref<1x256xf32, #tpu.memory_space<vmem>>, %arg4: memref<1x256xf32, #tpu.memory_space<vmem>>, %arg5: memref<128x256xf32, #tpu.memory_space<vmem>>, %arg6: memref<128x256xf32, #tpu.memory_space<vmem>>) attributes {dimension_semantics = [#tpu.dimension_semantics<parallel>], iteration_bounds = array<i64: 2>, scalar_prefetch = 0 : i64, scratch_operands = 0 : i64, tpu.core_type = #tpu.core_type<tc>, window_params = [{pipeline_mode = #tpu.pipeline_mode<synchronous>, transform_indices = @transform_0, window_bounds = array<i64: 128, 128>}, {transform_indices = @transform_1, window_bounds = array<i64: 128, 256>}, {transform_indices = @transform_2, window_bounds = array<i64: 1, 256>}, {transform_indices = @transform_3, window_bounds = array<i64: 1, 256>}, {transform_indices = @transform_4, window_bounds = array<i64: 128, 256>}, {transform_indices = @transform_5, window_bounds = array<i64: 128, 256>}]} {
    %c0 = arith.constant 0 : index
    %c0_0 = arith.constant 0 : index
    %0 = vector.load %arg1[%c0, %c0_0] : memref<128x128xbf16, #tpu.memory_space<vmem>>, vector<128x128xbf16>
    %c0_1 = arith.constant 0 : index
    %c0_2 = arith.constant 0 : index
    %1 = vector.load %arg2[%c0_1, %c0_2] : memref<128x256xbf16, #tpu.memory_space<vmem>>, vector<128x256xbf16>
    %cst = arith.constant dense<0.000000e+00> : vector<128x256xf32>
    %2 = tpu.matmul %0, %1, %cst {dimension_numbers = #tpu.dot_dimension_numbers<[1], [0], [0], [1], [0, 0, 1, 1], [], []>} : vector<128x128xbf16>, vector<128x256xbf16>, vector<128x256xf32> -> vector<128x256xf32>
    %cst_3 = arith.constant dense<0.000000e+00> : vector<256xf32>
    %3 = vector.multi_reduction <add>, %2, %cst_3 [0] : vector<128x256xf32> to vector<256xf32>
    %4 = vector.shape_cast %3 : vector<256xf32> to vector<1x256xf32>
    %5 = arith.mulf %2, %2 : vector<128x256xf32>
    %cst_4 = arith.constant dense<0.000000e+00> : vector<256xf32>
    %6 = vector.multi_reduction <add>, %5, %cst_4 [0] : vector<128x256xf32> to vector<256xf32>
    %7 = vector.shape_cast %6 : vector<256xf32> to vector<1x256xf32>
    %cst_5 = arith.constant 7.812500e-03 : f32
    %8 = vector.broadcast %cst_5 : f32 to vector<1x256xf32>
    %9 = arith.mulf %4, %8 : vector<1x256xf32>
    %cst_6 = arith.constant 7.812500e-03 : f32
    %10 = vector.broadcast %cst_6 : f32 to vector<1x256xf32>
    %11 = arith.mulf %7, %10 : vector<1x256xf32>
    %12 = arith.mulf %9, %9 : vector<1x256xf32>
    %13 = arith.subf %11, %12 : vector<1x256xf32>
    %cst_7 = arith.constant 9.99999974E-6 : f32
    %14 = vector.broadcast %cst_7 : f32 to vector<1x256xf32>
    %15 = arith.addf %13, %14 : vector<1x256xf32>
    %16 = math.rsqrt %15 : vector<1x256xf32>
    %c0_8 = arith.constant 0 : index
    %c0_9 = arith.constant 0 : index
    %17 = vector.load %arg3[%c0_8, %c0_9] : memref<1x256xf32, #tpu.memory_space<vmem>>, vector<1x256xf32>
    %18 = arith.mulf %16, %17 : vector<1x256xf32>
    %c0_10 = arith.constant 0 : index
    %c0_11 = arith.constant 0 : index
    %19 = vector.load %arg4[%c0_10, %c0_11] : memref<1x256xf32, #tpu.memory_space<vmem>>, vector<1x256xf32>
    %20 = arith.mulf %9, %18 : vector<1x256xf32>
    %21 = arith.subf %19, %20 : vector<1x256xf32>
    %22 = vector.broadcast %18 : vector<1x256xf32> to vector<128x256xf32>
    %23 = arith.mulf %2, %22 : vector<128x256xf32>
    %24 = vector.broadcast %21 : vector<1x256xf32> to vector<128x256xf32>
    %25 = arith.addf %23, %24 : vector<128x256xf32>
    %c0_12 = arith.constant 0 : index
    %c0_13 = arith.constant 0 : index
    %26 = vector.load %arg5[%c0_12, %c0_13] : memref<128x256xf32, #tpu.memory_space<vmem>>, vector<128x256xf32>
    %27 = arith.addf %25, %26 : vector<128x256xf32>
    %c0_14 = arith.constant 0 : index
    %c0_15 = arith.constant 0 : index
    %28 = vector.load %arg6[%c0_14, %c0_15] : memref<128x256xf32, #tpu.memory_space<vmem>>, vector<128x256xf32>
    tpu.vector_store %arg6[%c0_14, %c0_15], %27 {strides = array<i32>} : memref<128x256xf32, #tpu.memory_space<vmem>>, vector<128x256xf32>,
    return
  }
  func.func @transform_0(%arg0: i32) -> (i32, i32) {
    %c0_i32 = arith.constant 0 : i32
    %c0_i32_0 = arith.constant 0 : i32
    %c0_i32_1 = arith.constant 0 : i32
    return %c0_i32, %c0_i32_0 : i32, i32
  }
  func.func @transform_1(%arg0: i32) -> (i32, i32) {
    %c0_i32 = arith.constant 0 : i32
    %c0_i32_0 = arith.constant 0 : i32
    return %c0_i32, %arg0 : i32, i32
  }
  func.func @transform_2(%arg0: i32) -> (i32, i32) {
    %c0_i32 = arith.constant 0 : i32
    %c0_i32_0 = arith.constant 0 : i32
    return %c0_i32, %arg0 : i32, i32
  }
  func.func @transform_3(%arg0: i32) -> (i32, i32) {
    %c0_i32 = arith.constant 0 : i32
    %c0_i32_0 = arith.constant 0 : i32
    return %c0_i32, %arg0 : i32, i32
  }
  func.func @transform_4(%arg0: i32) -> (i32, i32) {
    %c0_i32 = arith.constant 0 : i32
    %c0_i32_0 = arith.constant 0 : i32
    return %c0_i32, %arg0 : i32, i32
  }
  func.func @transform_5(%arg0: i32) -> (i32, i32) {
    %c0_i32 = arith.constant 0 : i32
    %c0_i32_0 = arith.constant 0 : i32
    return %c0_i32, %arg0 : i32, i32
  }
}

</mosaic_0001>

<llo_original>
// kernel: tpu_custom_call.1
$region0: #{tpu_custom_call.1}
  #allocation0 [shape = 'u32[]', space=smem, size = 0x4, offset = 0x4, fixed_abs, tag = 'smem constant byte address 0x4 - core index']
  #allocation1 [shape = 'u32[72,128]{1,0:T(1,128)}', space=vmem, size = 0x9000, scoped, tag = 'internal scratch']
  %s0 = inlined_call_operand.vmem [shape: bf16[128,128], index: 0, kind: input, shape index: {}]
  %s1 = inlined_call_operand.vmem [shape: bf16[128,512], index: 1, kind: input, shape index: {}]
  %s2 = inlined_call_operand.vmem [shape: f32[1,512], index: 2, kind: input, shape index: {}]
  %s3 = inlined_call_operand.vmem [shape: f32[1,512], index: 3, kind: input, shape index: {}]
  %s4 = inlined_call_operand.hbm [shape: f32[128,512], index: 4, kind: input, shape index: {}, may-alias: {4,5}]
  %s5 = inlined_call_operand.hbm [shape: f32[128,512], index: 5, kind: output, shape index: {}, may-alias: {4,5}]
  %s6 = sld [smem:[#allocation0]]
  $region95: #{tpu_custom_call.1} parent=0
    _
  %s8 = ssub.s32 1, %s6
  %s9 = scalar_select 0, %s8, %s6
  $region1: #{tpu_custom_call.1} parent=0
    #allocation2 [shape = 'u8[131072]{0}', space=vmem, size = 0x20000, scoped, tag = 'input window, operand 1']
    #allocation3 [shape = 'u8[262144]{0}', space=vmem, size = 0x40000, scoped, tag = 'input window, operand 4']
    #allocation4 [shape = 's32[2]{0}', space=sflag, size = 0x8, scoped, tag = 'scoped memory for tpu_custom_call.1']
    #allocation5 [shape = 's32[2]{0}', space=sflag, size = 0x8, scoped, tag = 'scoped memory for tpu_custom_call.1']
    #allocation6 [shape = 'u8[262144]{0}', space=vmem, size = 0x40000, scoped, tag = 'output window, operand 0']
    %10 = vsyncpa [#allocation4], 0
    %s11 = scalar_lea.sflag [#allocation4], 1
    %12 = vsyncpa %s11, 0
    %13 = vsyncpa [#allocation5], 0
    %s14 = scalar_lea.sflag [#allocation5], 1
    %15 = vsyncpa %s14, 0
    loop: start=0, step=1, limit=4
    $region2: #{tpu_custom_call.1} parent=1 // loop_pre_header
      _
    $region3: #{tpu_custom_call.1} parent=1 // loop_header
      %s17 = sphi 0, %s21
      %p18 = scmp.ge.s32.totalorder %s17, 4
      %s25 = sphi 0, %s25
      %s27 = sphi 0, %s25
      %s28 = sphi 0, %s27
      %s42 = sphi 0, %s28
      %s48 = sphi 0, %s50
      %s51 = sphi 0, %s48
      %s52 = sphi 0, %s51
      %s68 = sphi 0, %s52
      %s74 = sphi 0, %s76
      %s77 = sphi 0, %s74
      %s78 = sphi 0, %s77
      %s94 = sphi 0, %s78
      %s100 = sphi 0, %s102
      %s103 = sphi 0, %s100
      %s104 = sphi 0, %s103
      %s120 = sphi 0, %s104
      %s126 = sphi 0, %s128
      %s129 = sphi 0, %s126
      %s130 = sphi 0, %s129
      %s146 = sphi 0, %s130
      %s152 = sphi 0, %s154
      %s155 = sphi 0, %s152
      %s156 = sphi 0, %s155
      %s172 = sphi 0, %s156
    $region4: #{tpu_custom_call.1} parent=1 // loop_header_branch
      %20 = sbr.rel (%p18) target = $region8
    $region5: #{tpu_custom_call.1} parent=1 // loop_body
      %s22 = ssub.s32 %s17, 1
      %s23 = ssub.s32 %s17, 2
      %s24 = sadd.s32 %s17, 1
      %s26 = sadd.s32 %s25, 1
      %p29 = scmp.eq.s32.totalorder %s17, 1
      %p30 = scmp.ne.s32.totalorder %s25, %s27
      %p31 = scmp.eq.s32.totalorder %s17, 0
      %p32 = por %p30, %p31
      %p33 = scmp.ne.s32.totalorder %s25, %s27
      %p34 = scmp.eq.s32.totalorder %s22, 1
      %p35 = por %p33, %p34
      %p36 = scmp.ne.s32.totalorder %s27, %s28
      %p37 = scmp.eq.s32.totalorder %s22, 0
      %p38 = por %p36, %p37
      %p39 = scmp.ne.s32.totalorder %s27, %s28
      %p40 = scmp.eq.s32.totalorder %s23, 1
      %p41 = por %p39, %p40
      %p43 = scmp.ne.s32.totalorder %s28, %s42
      %p44 = scmp.eq.s32.totalorder %s23, 0
      %p45 = por %p43, %p44
      %s46 = ssub.s32 %s17, %s24
      %p47 = scmp.eq.s32.totalorder %s46, 0
      %s49 = sadd.s32 %s48, 1
      %s50 = scalar_select %p47, %s48, %s49
      %p53 = pneg %p47
      %p54 = scmp.eq.s32.totalorder %s17, 1
      %p55 = por %p53, %p54
      %p56 = scmp.ne.s32.totalorder %s48, %s51
      %p57 = scmp.eq.s32.totalorder %s17, 0
      %p58 = por %p56, %p57
      %p59 = scmp.ne.s32.totalorder %s48, %s51
      %p60 = scmp.eq.s32.totalorder %s22, 1
      %p61 = por %p59, %p60
      %p62 = scmp.ne.s32.totalorder %s51, %s52
      %p63 = scmp.eq.s32.totalorder %s22, 0
      %p64 = por %p62, %p63
      %p65 = scmp.ne.s32.totalorder %s51, %s52
      %p66 = scmp.eq.s32.totalorder %s23, 1
      %p67 = por %p65, %p66
      %p69 = scmp.ne.s32.totalorder %s52, %s68
      %p70 = scmp.eq.s32.totalorder %s23, 0
      %p71 = por %p69, %p70
      %s72 = ssub.s32 %s17, %s24
      %p73 = scmp.eq.s32.totalorder %s72, 0
      %s75 = sadd.s32 %s74, 1
      %s76 = scalar_select %p73, %s74, %s75
      %p79 = pneg %p73
      %p80 = scmp.eq.s32.totalorder %s17, 1
      %p81 = por %p79, %p80
      %p82 = scmp.ne.s32.totalorder %s74, %s77
      %p83 = scmp.eq.s32.totalorder %s17, 0
      %p84 = por %p82, %p83
      %p85 = scmp.ne.s32.totalorder %s74, %s77
      %p86 = scmp.eq.s32.totalorder %s22, 1
      %p87 = por %p85, %p86
      %p88 = scmp.ne.s32.totalorder %s77, %s78
      %p89 = scmp.eq.s32.totalorder %s22, 0
      %p90 = por %p88, %p89
      %p91 = scmp.ne.s32.totalorder %s77, %s78
      %p92 = scmp.eq.s32.totalorder %s23, 1
      %p93 = por %p91, %p92
      %p95 = scmp.ne.s32.totalorder %s78, %s94
      %p96 = scmp.eq.s32.totalorder %s23, 0
      %p97 = por %p95, %p96
      %s98 = ssub.s32 %s17, %s24
      %p99 = scmp.eq.s32.totalorder %s98, 0
      %s101 = sadd.s32 %s100, 1
      %s102 = scalar_select %p99, %s100, %s101
      %p105 = pneg %p99
      %p106 = scmp.eq.s32.totalorder %s17, 1
      %p107 = por %p105, %p106
      %p108 = scmp.ne.s32.totalorder %s100, %s103
      %p109 = scmp.eq.s32.totalorder %s17, 0
      %p110 = por %p108, %p109
      %p111 = scmp.ne.s32.totalorder %s100, %s103
      %p112 = scmp.eq.s32.totalorder %s22, 1
      %p113 = por %p111, %p112
      %p114 = scmp.ne.s32.totalorder %s103, %s104
      %p115 = scmp.eq.s32.totalorder %s22, 0
      %p116 = por %p114, %p115
      %p117 = scmp.ne.s32.totalorder %s103, %s104
      %p118 = scmp.eq.s32.totalorder %s23, 1
      %p119 = por %p117, %p118
      %p121 = scmp.ne.s32.totalorder %s104, %s120
      %p122 = scmp.eq.s32.totalorder %s23, 0
      %p123 = por %p121, %p122
      %s124 = ssub.s32 %s17, %s24
      %p125 = scmp.eq.s32.totalorder %s124, 0
      %s127 = sadd.s32 %s126, 1
      %s128 = scalar_select %p125, %s126, %s127
      %p131 = pneg %p125
      %p132 = scmp.eq.s32.totalorder %s17, 1
      %p133 = por %p131, %p132
      %p134 = scmp.ne.s32.totalorder %s126, %s129
      %p135 = scmp.eq.s32.totalorder %s17, 0
      %p136 = por %p134, %p135
      %p137 = scmp.ne.s32.totalorder %s126, %s129
      %p138 = scmp.eq.s32.totalorder %s22, 1
      %p139 = por %p137, %p138
      %p140 = scmp.ne.s32.totalorder %s129, %s130
      %p141 = scmp.eq.s32.totalorder %s22, 0
      %p142 = por %p140, %p141
      %p143 = scmp.ne.s32.totalorder %s129, %s130
      %p144 = scmp.eq.s32.totalorder %s23, 1
      %p145 = por %p143, %p144
      %p147 = scmp.ne.s32.totalorder %s130, %s146
      %p148 = scmp.eq.s32.totalorder %s23, 0
      %p149 = por %p147, %p148
      %s150 = ssub.s32 %s17, %s24
      %p151 = scmp.eq.s32.totalorder %s150, 0
      %s153 = sadd.s32 %s152, 1
      %s154 = scalar_select %p151, %s152, %s153
      %p157 = pneg %p151
      %p158 = scmp.eq.s32.totalorder %s17, 1
      %p159 = por %p157, %p158
      %p160 = scmp.ne.s32.totalorder %s152, %s155
      %p161 = scmp.eq.s32.totalorder %s17, 0
      %p162 = por %p160, %p161
      %p163 = scmp.ne.s32.totalorder %s152, %s155
      %p164 = scmp.eq.s32.totalorder %s22, 1
      %p165 = por %p163, %p164
      %p166 = scmp.ne.s32.totalorder %s155, %s156
      %p167 = scmp.eq.s32.totalorder %s22, 0
      %p168 = por %p166, %p167
      %p169 = scmp.ne.s32.totalorder %s155, %s156
      %p170 = scmp.eq.s32.totalorder %s23, 1
      %p171 = por %p169, %p170
      %p173 = scmp.ne.s32.totalorder %s156, %s172
      %p174 = scmp.eq.s32.totalorder %s23, 0
      %p175 = por %p173, %p174
      %p176 = scmp.le.s32.totalorder 1, %s17
      %p177 = scmp.lt.s32.totalorder %s17, 3
      %p178 = pnand %p176, %p177
      %p179 = pneg %p178
      // Predicated region
      $region9: #{tpu_custom_call.1} parent=5 // pred_check
        _
      $region10: #{tpu_custom_call.1} parent=5 // pred_check_branch
        %181 = sbr.rel (%p178) target = $region12
      $region11: #{tpu_custom_call.1} parent=5 // pred_region
        %s182 = ssub.s32 %s17, 1
        // Predicated region
        $region13: #{tpu_custom_call.1} parent=11 // pred_check
          %p183 = pneg %p38
        $region14: #{tpu_custom_call.1} parent=11 // pred_check_branch
          %185 = sbr.rel (%p183) target = $region16
        $region15: #{tpu_custom_call.1} parent=11 // pred_region
          _
        $region16: #{tpu_custom_call.1} parent=11 // pred_fallthru
          _
      $region12: #{tpu_custom_call.1} parent=5 // pred_fallthru
        _
      %p186 = scmp.lt.s32.totalorder %s17, 2
      // Predicated region
      $region17: #{tpu_custom_call.1} parent=5 // pred_check
        %p187 = pneg %p186
      $region18: #{tpu_custom_call.1} parent=5 // pred_check_branch
        %189 = sbr.rel (%p187) target = $region20
      $region19: #{tpu_custom_call.1} parent=5 // pred_region
        // Predicated region
        $region21: #{tpu_custom_call.1} parent=19 // pred_check
          %p190 = pneg %p58
        $region22: #{tpu_custom_call.1} parent=19 // pred_check_branch
          %192 = sbr.rel (%p190) target = $region24
        $region23: #{tpu_custom_call.1} parent=19 // pred_region
          %s193 = sand.u32 %s48, 1
          %s194 = sand.u32 %s48, 1
          %s195 = smul.addr %s194, 128
          %s196 = scalar_lea.vmem [#allocation2], %s195
          %s197 = smul.u32 2, %s17
          %s198 = smul.addr %s197, 4
          %s199 = scalar_lea.vmem %s1, %s198
          // Predicated region
          $region25: #{tpu_custom_call.1} parent=23 // pred_check
            _
          $region26: #{tpu_custom_call.1} parent=23 // pred_check_branch
            %201 = sbr.rel (0) target = $region28
          $region27: #{tpu_custom_call.1} parent=23 // pred_region
            // Predicated region
            $region29: #{tpu_custom_call.1} parent=27 // pred_check
              _
            $region30: #{tpu_custom_call.1} parent=27 // pred_check_branch
              %203 = sbr.rel (0) target = $region32
            $region31: #{tpu_custom_call.1} parent=27 // pred_region
              // Predicated region
              $region44: #{tpu_custom_call.1} parent=31 // pred_check
                _
              $region45: #{tpu_custom_call.1} parent=31 // pred_check_branch
                %249 = sbr.rel (0) target = $region47
              $region46: #{tpu_custom_call.1} parent=31 // pred_region
                loop: start=0, step=1, limit=1
                $region48: #{tpu_custom_call.1} parent=46 // loop_pre_header
                  _
                $region49: #{tpu_custom_call.1} parent=46 // loop_header
                  %s251 = sphi 0, %s255
                  %p252 = scmp.ge.s32.totalorder %s251, 1
                  %s256 = sphi %s199, %s199
                  %s257 = sphi %s196, %s196
                $region50: #{tpu_custom_call.1} parent=46 // loop_header_branch
                  %254 = sbr.rel (%p252) target = $region54
                $region51: #{tpu_custom_call.1} parent=46 // loop_body
                  %v258 = vld [vmem:[%s256] sm:$0xff]
                  %259 = vst [vmem:[%s257] sm:$0xff] %v258
                  %v260 = vld [vmem:[%s256 + $0x10] sm:$0xff]
                  %261 = vst [vmem:[%s257 + $0x8] sm:$0xff] %v260
                  %v262 = vld [vmem:[%s256 + $0x20] sm:$0xff]
                  %263 = vst [vmem:[%s257 + $0x10] sm:$0xff] %v262
                  %v264 = vld [vmem:[%s256 + $0x30] sm:$0xff]
                  %265 = vst [vmem:[%s257 + $0x18] sm:$0xff] %v264
                  %v266 = vld [vmem:[%s256 + $0x40] sm:$0xff]
                  %267 = vst [vmem:[%s257 + $0x20] sm:$0xff] %v266
                  %v268 = vld [vmem:[%s256 + $0x50] sm:$0xff]
                  %269 = vst [vmem:[%s257 + $0x28] sm:$0xff] %v268
                  %v270 = vld [vmem:[%s256 + $0x60] sm:$0xff]
                  %271 = vst [vmem:[%s257 + $0x30] sm:$0xff] %v270
                  %v272 = vld [vmem:[%s256 + $0x70] sm:$0xff]
                  %273 = vst [vmem:[%s257 + $0x38] sm:$0xff] %v272
                  %v274 = vld [vmem:[%s256 + $0x80] sm:$0xff]
                  %275 = vst [vmem:[%s257 + $0x40] sm:$0xff] %v274
                  %v276 = vld [vmem:[%s256 + $0x90] sm:$0xff]
                  %277 = vst [vmem:[%s257 + $0x48] sm:$0xff] %v276
                  %v278 = vld [vmem:[%s256 + $0xa0] sm:$0xff]
                  %279 = vst [vmem:[%s257 + $0x50] sm:$0xff] %v278
                  %v280 = vld [vmem:[%s256 + $0xb0] sm:$0xff]
                  %281 = vst [vmem:[%s257 + $0x58] sm:$0xff] %v280
                  %v282 = vld [vmem:[%s256 + $0xc0] sm:$0xff]
                  %283 = vst [vmem:[%s257 + $0x60] sm:$0xff] %v282
                  %v284 = vld [vmem:[%s256 + $0xd0] sm:$0xff]
                  %285 = vst [vmem:[%s257 + $0x68] sm:$0xff] %v284
                  %v286 = vld [vmem:[%s256 + $0xe0] sm:$0xff]
                  %287 = vst [vmem:[%s257 + $0x70] sm:$0xff] %v286
                  %v288 = vld [vmem:[%s256 + $0xf0] sm:$0xff]
                  %289 = vst [vmem:[%s257 + $0x78] sm:$0xff] %v288
                $region52: #{tpu_custom_call.1} parent=46 // loop_footer
                  %s255 = sadd.s32 1, %s251
                $region53: #{tpu_custom_call.1} parent=46 // loop_footer_branch
                  %250 = sbr.rel target = $region49
                $region54: #{tpu_custom_call.1} parent=46 // loop_exit
                  _
              $region47: #{tpu_custom_call.1} parent=31 // pred_fallthru
                _
              // Predicated region
              $region55: #{tpu_custom_call.1} parent=31 // pred_check
                _
              $region56: #{tpu_custom_call.1} parent=31 // pred_check_branch
                %291 = sbr.rel target = $region58
              $region57: #{tpu_custom_call.1} parent=31 // pred_region
                _
              $region58: #{tpu_custom_call.1} parent=31 // pred_fallthru
                _
            $region32: #{tpu_custom_call.1} parent=27 // pred_fallthru
              _
            // Predicated region
            $region33: #{tpu_custom_call.1} parent=27 // pred_check
              _
            $region34: #{tpu_custom_call.1} parent=27 // pred_check_branch
              %205 = sbr.rel target = $region36
            $region35: #{tpu_custom_call.1} parent=27 // pred_region
              %s207 = ssub.s32 256, 1
              loop: start=0, step=1, limit=1
              $region37: #{tpu_custom_call.1} parent=35 // loop_pre_header
                _
              $region38: #{tpu_custom_call.1} parent=35 // loop_header
                %s209 = sphi 0, %s213
                %p210 = scmp.ge.s32.totalorder %s209, 1
                %s214 = sphi %s199, %s199
                %s215 = sphi %s196, %s196
              $region39: #{tpu_custom_call.1} parent=35 // loop_header_branch
                %212 = sbr.rel (%p210) target = $region43
              $region40: #{tpu_custom_call.1} parent=35 // loop_body
                %v216 = vld [vmem:[%s214] sm:%s207]
                %217 = vst [vmem:[%s215] sm:%s207] %v216
                %v218 = vld [vmem:[%s214 + $0x10] sm:%s207]
                %219 = vst [vmem:[%s215 + $0x8] sm:%s207] %v218
                %v220 = vld [vmem:[%s214 + $0x20] sm:%s207]
                %221 = vst [vmem:[%s215 + $0x10] sm:%s207] %v220
                %v222 = vld [vmem:[%s214 + $0x30] sm:%s207]
                %223 = vst [vmem:[%s215 + $0x18] sm:%s207] %v222
                %v224 = vld [vmem:[%s214 + $0x40] sm:%s207]
                %225 = vst [vmem:[%s215 + $0x20] sm:%s207] %v224
                %v226 = vld [vmem:[%s214 + $0x50] sm:%s207]
                %227 = vst [vmem:[%s215 + $0x28] sm:%s207] %v226
                %v228 = vld [vmem:[%s214 + $0x60] sm:%s207]
                %229 = vst [vmem:[%s215 + $0x30] sm:%s207] %v228
                %v230 = vld [vmem:[%s214 + $0x70] sm:%s207]
                %231 = vst [vmem:[%s215 + $0x38] sm:%s207] %v230
                %v232 = vld [vmem:[%s214 + $0x80] sm:%s207]
                %233 = vst [vmem:[%s215 + $0x40] sm:%s207] %v232
                %v234 = vld [vmem:[%s214 + $0x90] sm:%s207]
                %235 = vst [vmem:[%s215 + $0x48] sm:%s207] %v234
                %v236 = vld [vmem:[%s214 + $0xa0] sm:%s207]
                %237 = vst [vmem:[%s215 + $0x50] sm:%s207] %v236
                %v238 = vld [vmem:[%s214 + $0xb0] sm:%s207]
                %239 = vst [vmem:[%s215 + $0x58] sm:%s207] %v238
                %v240 = vld [vmem:[%s214 + $0xc0] sm:%s207]
                %241 = vst [vmem:[%s215 + $0x60] sm:%s207] %v240
                %v242 = vld [vmem:[%s214 + $0xd0] sm:%s207]
                %243 = vst [vmem:[%s215 + $0x68] sm:%s207] %v242
                %v244 = vld [vmem:[%s214 + $0xe0] sm:%s207]
                %245 = vst [vmem:[%s215 + $0x70] sm:%s207] %v244
                %v246 = vld [vmem:[%s214 + $0xf0] sm:%s207]
                %247 = vst [vmem:[%s215 + $0x78] sm:%s207] %v246
              $region41: #{tpu_custom_call.1} parent=35 // loop_footer
                %s213 = sadd.s32 1, %s209
              $region42: #{tpu_custom_call.1} parent=35 // loop_footer_branch
                %208 = sbr.rel target = $region38
              $region43: #{tpu_custom_call.1} parent=35 // loop_exit
                _
            $region36: #{tpu_custom_call.1} parent=27 // pred_fallthru
              _
          $region28: #{tpu_custom_call.1} parent=23 // pred_fallthru
            _
          %292 = vnop
        $region24: #{tpu_custom_call.1} parent=19 // pred_fallthru
          _
        // Predicated region
        $region59: #{tpu_custom_call.1} parent=19 // pred_check
          %p293 = pneg %p84
        $region60: #{tpu_custom_call.1} parent=19 // pred_check_branch
          %295 = sbr.rel (%p293) target = $region62
        $region61: #{tpu_custom_call.1} parent=19 // pred_region
          %s296 = smul.u32 2, %s17
          %p297 = scmp.lt.s32.totalorder %s296, 3
          %s298 = scalar_select %p297, %s296, 3
          %s299 = scalar_lea.vmem %s2, %s298
          %s300 = smul.u32 2, %s17
        $region62: #{tpu_custom_call.1} parent=19 // pred_fallthru
          _
        // Predicated region
        $region63: #{tpu_custom_call.1} parent=19 // pred_check
          %p301 = pneg %p110
        $region64: #{tpu_custom_call.1} parent=19 // pred_check_branch
          %303 = sbr.rel (%p301) target = $region66
        $region65: #{tpu_custom_call.1} parent=19 // pred_region
          %s304 = smul.u32 2, %s17
          %p305 = scmp.lt.s32.totalorder %s304, 3
          %s306 = scalar_select %p305, %s304, 3
          %s307 = scalar_lea.vmem %s3, %s306
          %s308 = smul.u32 2, %s17
        $region66: #{tpu_custom_call.1} parent=19 // pred_fallthru
          _
        // Predicated region
        $region67: #{tpu_custom_call.1} parent=19 // pred_check
          %p309 = pneg %p136
        $region68: #{tpu_custom_call.1} parent=19 // pred_check_branch
          %311 = sbr.rel (%p309) target = $region70
        $region69: #{tpu_custom_call.1} parent=19 // pred_region
          %s312 = sand.u32 %s126, 1
          %s313 = scalar_lea.sflag [#allocation4], %s312
          %s314 = sand.u32 %s126, 1
          %s315 = smul.addr %s314, 256
          %s316 = scalar_lea.vmem [#allocation3], %s315
          %s317 = smul.u32 2, %s17
          %319 = vsyncadd %s313, 0
          %s320 = smul.addr %s317, 8
          %s321 = scalar_lea.hbm %s4, %s320
          %s322 = sshll.u32 %s321, 4
          %s323 = int_to_ptr.hbm [resolvable:$true] %s322
          %s324 = sshll.u32 %s316, 4
          %s325 = int_to_ptr.vmem [resolvable:$true] %s324
          %330 = dma.hbm_to_vmem [thread:$0]  %s323, 4096, %s325, %s313, 512, 256, 16
        $region70: #{tpu_custom_call.1} parent=19 // pred_fallthru
          _
      $region20: #{tpu_custom_call.1} parent=5 // pred_fallthru
        _
      %p331 = scmp.le.s32.totalorder 1, %s17
      %p332 = scmp.lt.s32.totalorder %s17, 3
      %p333 = pnand %p331, %p332
      %p334 = pneg %p333
      // Predicated region
      $region71: #{tpu_custom_call.1} parent=5 // pred_check
        _
      $region72: #{tpu_custom_call.1} parent=5 // pred_check_branch
        %336 = sbr.rel (%p333) target = $region74
      $region73: #{tpu_custom_call.1} parent=5 // pred_region
        %s337 = ssub.s32 %s17, 1
        %s338 = sand.u32 %s51, 1
        %s339 = sand.u32 %s51, 1
        %s340 = smul.addr %s339, 128
        %s341 = scalar_lea.vmem [#allocation2], %s340
        // Predicated region
        $region75: #{tpu_custom_call.1} parent=73 // pred_check
          %p342 = pneg %p64
        $region76: #{tpu_custom_call.1} parent=73 // pred_check_branch
          %344 = sbr.rel (%p342) target = $region78
        $region77: #{tpu_custom_call.1} parent=73 // pred_region
          _
        $region78: #{tpu_custom_call.1} parent=73 // pred_fallthru
          _
        %s345 = sand.u32 %s129, 1
        %s346 = scalar_lea.sflag [#allocation4], %s345
        %s347 = sand.u32 %s129, 1
        %s348 = smul.addr %s347, 256
        %s349 = scalar_lea.vmem [#allocation3], %s348
        // Predicated region
        $region79: #{tpu_custom_call.1} parent=73 // pred_check
          %p350 = pneg %p142
        $region80: #{tpu_custom_call.1} parent=73 // pred_check_branch
          %352 = sbr.rel (%p350) target = $region82
        $region81: #{tpu_custom_call.1} parent=73 // pred_region
          %354 = dma.done %s346, 4096
        $region82: #{tpu_custom_call.1} parent=73 // pred_fallthru
          _
        %p355 = pneg %p38
        %p356 = pneg %p35
        %s357 = sand.u32 %s51, 1
        %s358 = sand.u32 %s51, 1
        %s359 = smul.addr %s358, 128
        %s360 = scalar_lea.vmem [#allocation2], %s359
        %p361 = pneg %p64
        %p362 = pneg %p61
        %s363 = smul.u32 2, %s22
        %p364 = scmp.lt.s32.totalorder %s363, 3
        %s365 = scalar_select %p364, %s363, 3
        %s366 = scalar_lea.vmem %s2, %s365
        %p367 = pneg %p90
        %p368 = pneg %p87
        %s369 = smul.u32 2, %s22
        %p370 = scmp.lt.s32.totalorder %s369, 3
        %s371 = scalar_select %p370, %s369, 3
        %s372 = scalar_lea.vmem %s3, %s371
        %p373 = pneg %p116
        %p374 = pneg %p113
        %s375 = sand.u32 %s129, 1
        %s376 = scalar_lea.sflag [#allocation4], %s375
        %s377 = sand.u32 %s129, 1
        %s378 = smul.addr %s377, 256
        %s379 = scalar_lea.vmem [#allocation3], %s378
        %p380 = pneg %p142
        %p381 = pneg %p139
        %p382 = pneg %p168
        %p383 = pneg %p165
        %s384 = sand.u32 %s155, 1
        %s385 = scalar_lea.sflag [#allocation5], %s384
        %s386 = sand.u32 %s155, 1
        %s387 = smul.addr %s386, 256
        %s388 = scalar_lea.vmem [#allocation6], %s387
        %s389 = smul.u32 2, %s22
        %s390 = smul.u32 2, %s22
        %p391 = scmp.lt.s32.totalorder %s390, 3
        %s392 = scalar_select %p391, %s390, 3
        %s393 = scalar_lea.vmem %s2, %s392
        %s394 = smul.u32 2, %s22
        %s395 = smul.u32 2, %s22
        %p396 = scmp.lt.s32.totalorder %s395, 3
        %s397 = scalar_select %p396, %s395, 3
        %s398 = scalar_lea.vmem %s3, %s397
        %s399 = smul.u32 2, %s22
        %s400 = smul.u32 2, %s22
        %s401 = smul.u32 2, %s22
        %v402 = vld [vmem:[%s0] sm:$0xf]
        %v403 = vld [vmem:[%s0 + $0x4] sm:$0xf]
        %v404 = vld [vmem:[%s0 + $0x8] sm:$0xf]
        %v405 = vld [vmem:[%s0 + $0xc] sm:$0xf]
        %v406 = vld [vmem:[%s0 + $0x10] sm:$0xf]
        %v407 = vld [vmem:[%s0 + $0x14] sm:$0xf]
        %v408 = vld [vmem:[%s0 + $0x18] sm:$0xf]
        %v409 = vld [vmem:[%s0 + $0x1c] sm:$0xf]
        %v410 = vld [vmem:[%s0 + $0x20] sm:$0xf]
        %v411 = vld [vmem:[%s0 + $0x24] sm:$0xf]
        %v412 = vld [vmem:[%s0 + $0x28] sm:$0xf]
        %v413 = vld [vmem:[%s0 + $0x2c] sm:$0xf]
        %v414 = vld [vmem:[%s0 + $0x30] sm:$0xf]
        %v415 = vld [vmem:[%s0 + $0x34] sm:$0xf]
        %v416 = vld [vmem:[%s0 + $0x38] sm:$0xf]
        %v417 = vld [vmem:[%s0 + $0x3c] sm:$0xf]
        %v418 = vld [vmem:[%s341] sm:$0xff]
        %v419 = vld [vmem:[%s341 + $0x8] sm:$0xff]
        %v420 = vld [vmem:[%s341 + $0x10] sm:$0xff]
        %v421 = vld [vmem:[%s341 + $0x18] sm:$0xff]
        %v422 = vld [vmem:[%s341 + $0x20] sm:$0xff]
        %v423 = vld [vmem:[%s341 + $0x28] sm:$0xff]
        %v424 = vld [vmem:[%s341 + $0x30] sm:$0xff]
        %v425 = vld [vmem:[%s341 + $0x38] sm:$0xff]
        %v426 = vld [vmem:[%s341 + $0x40] sm:$0xff]
        %v427 = vld [vmem:[%s341 + $0x48] sm:$0xff]
        %v428 = vld [vmem:[%s341 + $0x50] sm:$0xff]
        %v429 = vld [vmem:[%s341 + $0x58] sm:$0xff]
        %v430 = vld [vmem:[%s341 + $0x60] sm:$0xff]
        %v431 = vld [vmem:[%s341 + $0x68] sm:$0xff]
        %v432 = vld [vmem:[%s341 + $0x70] sm:$0xff]
        %v433 = vld [vmem:[%s341 + $0x78] sm:$0xff]
        %v450 = vunpack.c.l.b16 %v402
        %v451 = vunpack.c.l.b16 %v403
        %v452 = vunpack.c.l.b16 %v404
        %v453 = vunpack.c.l.b16 %v405
        %v454 = vunpack.c.l.b16 %v406
        %v455 = vunpack.c.l.b16 %v407
        %v456 = vunpack.c.l.b16 %v408
        %v457 = vunpack.c.l.b16 %v409
        %v458 = vunpack.c.l.b16 %v410
        %v459 = vunpack.c.l.b16 %v411
        %v460 = vunpack.c.l.b16 %v412
        %v461 = vunpack.c.l.b16 %v413
        %v462 = vunpack.c.l.b16 %v414
        %v463 = vunpack.c.l.b16 %v415
        %v464 = vunpack.c.l.b16 %v416
        %v465 = vunpack.c.l.b16 %v417
        %v466 = vpack.c.b16 %v451, %v450
        %v467 = vpack.c.b16 %v453, %v452
        %v468 = vpack.c.b16 %v455, %v454
        %v469 = vpack.c.b16 %v457, %v456
        %v470 = vpack.c.b16 %v459, %v458
        %v471 = vpack.c.b16 %v461, %v460
        %v472 = vpack.c.b16 %v463, %v462
        %v473 = vpack.c.b16 %v465, %v464
        %v498 = vunpack.c.l.b16 %v418
        %v499 = vunpack.c.h.b16 %v418
        %v500 = vunpack.c.l.b16 %v419
        %v501 = vunpack.c.h.b16 %v419
        %v502 = vunpack.c.l.b16 %v420
        %v503 = vunpack.c.h.b16 %v420
        %v504 = vunpack.c.l.b16 %v421
        %v505 = vunpack.c.h.b16 %v421
        %v506 = vunpack.c.l.b16 %v422
        %v507 = vunpack.c.h.b16 %v422
        %v508 = vunpack.c.l.b16 %v423
        %v509 = vunpack.c.h.b16 %v423
        %v510 = vunpack.c.l.b16 %v424
        %v511 = vunpack.c.h.b16 %v424
        %v512 = vunpack.c.l.b16 %v425
        %v513 = vunpack.c.h.b16 %v425
        %v514 = vunpack.c.l.b16 %v426
        %v515 = vunpack.c.h.b16 %v426
        %v516 = vunpack.c.l.b16 %v427
        %v517 = vunpack.c.h.b16 %v427
        %v518 = vunpack.c.l.b16 %v428
        %v519 = vunpack.c.h.b16 %v428
        %v520 = vunpack.c.l.b16 %v429
        %v521 = vunpack.c.h.b16 %v429
        %v522 = vunpack.c.l.b16 %v430
        %v523 = vunpack.c.h.b16 %v430
        %v524 = vunpack.c.l.b16 %v431
        %v525 = vunpack.c.h.b16 %v431
        %v526 = vunpack.c.l.b16 %v432
        %v527 = vunpack.c.h.b16 %v432
        %v528 = vunpack.c.l.b16 %v433
        %v529 = vunpack.c.h.b16 %v433
        %v530 = vpack.c.b16 %v500, %v498
        %v531 = vpack.c.b16 %v501, %v499
        %v532 = vpack.c.b16 %v504, %v502
        %v533 = vpack.c.b16 %v505, %v503
        %v534 = vpack.c.b16 %v508, %v506
        %v535 = vpack.c.b16 %v509, %v507
        %v536 = vpack.c.b16 %v512, %v510
        %v537 = vpack.c.b16 %v513, %v511
        %v538 = vpack.c.b16 %v516, %v514
        %v539 = vpack.c.b16 %v517, %v515
        %v540 = vpack.c.b16 %v520, %v518
        %v541 = vpack.c.b16 %v521, %v519
        %v542 = vpack.c.b16 %v524, %v522
        %v543 = vpack.c.b16 %v525, %v523
        %v544 = vpack.c.b16 %v528, %v526
        %v545 = vpack.c.b16 %v529, %v527
        %562 = vmatpush.bf16.msra.mxu0 %v544
        %563 = vmatpush.bf16.msra.mxu0 %v542
        %564 = vmatpush.bf16.msra.mxu0 %v540
        %565 = vmatpush.bf16.msra.mxu0 %v538
        %566 = vmatpush.bf16.msra.mxu0 %v536
        %567 = vmatpush.bf16.msra.mxu0 %v534
        %568 = vmatpush.bf16.msra.mxu0 %v532
        %569 = vmatpush.bf16.msra.mxu0 %v530
        %570 = vmatmul.bf16.gmra.mxu0 %v466
        %v571 = vpop.f32.mrf.mxu0
        %v572 = vadd.f32 0.0, %v571
        %v573 = vpop.f32.mrf.mxu0
        %v574 = vadd.f32 0.0, %v573
        %575 = vmatmul.bf16.gmra.mxu0 %v467
        %v576 = vpop.f32.mrf.mxu0
        %v577 = vadd.f32 0.0, %v576
        %v578 = vpop.f32.mrf.mxu0
        %v579 = vadd.f32 0.0, %v578
        %580 = vmatmul.bf16.gmra.mxu0 %v468
        %v581 = vpop.f32.mrf.mxu0
        %v582 = vadd.f32 0.0, %v581
        %v583 = vpop.f32.mrf.mxu0
        %v584 = vadd.f32 0.0, %v583
        %585 = vmatmul.bf16.gmra.mxu0 %v469
        %v586 = vpop.f32.mrf.mxu0
        %v587 = vadd.f32 0.0, %v586
        %v588 = vpop.f32.mrf.mxu0
        %v589 = vadd.f32 0.0, %v588
        %590 = vmatmul.bf16.gmra.mxu0 %v470
        %v591 = vpop.f32.mrf.mxu0
        %v592 = vadd.f32 0.0, %v591
        %v593 = vpop.f32.mrf.mxu0
        %v594 = vadd.f32 0.0, %v593
        %595 = vmatmul.bf16.gmra.mxu0 %v471
        %v596 = vpop.f32.mrf.mxu0
        %v597 = vadd.f32 0.0, %v596
        %v598 = vpop.f32.mrf.mxu0
        %v599 = vadd.f32 0.0, %v598
        %600 = vmatmul.bf16.gmra.mxu0 %v472
        %v601 = vpop.f32.mrf.mxu0
        %v602 = vadd.f32 0.0, %v601
        %v603 = vpop.f32.mrf.mxu0
        %v604 = vadd.f32 0.0, %v603
        %605 = vmatmul.bf16.gmra.mxu0 %v473
        %v606 = vpop.f32.mrf.mxu0
        %v607 = vadd.f32 0.0, %v606
        %v608 = vpop.f32.mrf.mxu0
        %v609 = vadd.f32 0.0, %v608
        %610 = vdwg.mxu0
        %611 = vmatpush.bf16.msra.mxu0 %v545
        %612 = vmatpush.bf16.msra.mxu0 %v543
        %613 = vmatpush.bf16.msra.mxu0 %v541
        %614 = vmatpush.bf16.msra.mxu0 %v539
        %615 = vmatpush.bf16.msra.mxu0 %v537
        %616 = vmatpush.bf16.msra.mxu0 %v535
        %617 = vmatpush.bf16.msra.mxu0 %v533
        %618 = vmatpush.bf16.msra.mxu0 %v531
        %619 = vmatmul.bf16.gmra.mxu0 %v466
        %v620 = vpop.f32.mrf.mxu0
        %v621 = vadd.f32 0.0, %v620
        %v622 = vpop.f32.mrf.mxu0
        %v623 = vadd.f32 0.0, %v622
        %624 = vmatmul.bf16.gmra.mxu0 %v467
        %v625 = vpop.f32.mrf.mxu0
        %v626 = vadd.f32 0.0, %v625
        %v627 = vpop.f32.mrf.mxu0
        %v628 = vadd.f32 0.0, %v627
        %629 = vmatmul.bf16.gmra.mxu0 %v468
        %v630 = vpop.f32.mrf.mxu0
        %v631 = vadd.f32 0.0, %v630
        %v632 = vpop.f32.mrf.mxu0
        %v633 = vadd.f32 0.0, %v632
        %634 = vmatmul.bf16.gmra.mxu0 %v469
        %v635 = vpop.f32.mrf.mxu0
        %v636 = vadd.f32 0.0, %v635
        %v637 = vpop.f32.mrf.mxu0
        %v638 = vadd.f32 0.0, %v637
        %639 = vmatmul.bf16.gmra.mxu0 %v470
        %v640 = vpop.f32.mrf.mxu0
        %v641 = vadd.f32 0.0, %v640
        %v642 = vpop.f32.mrf.mxu0
        %v643 = vadd.f32 0.0, %v642
        %644 = vmatmul.bf16.gmra.mxu0 %v471
        %v645 = vpop.f32.mrf.mxu0
        %v646 = vadd.f32 0.0, %v645
        %v647 = vpop.f32.mrf.mxu0
        %v648 = vadd.f32 0.0, %v647
        %649 = vmatmul.bf16.gmra.mxu0 %v472
        %v650 = vpop.f32.mrf.mxu0
        %v651 = vadd.f32 0.0, %v650
        %v652 = vpop.f32.mrf.mxu0
        %v653 = vadd.f32 0.0, %v652
        %654 = vmatmul.bf16.gmra.mxu0 %v473
        %v655 = vpop.f32.mrf.mxu0
        %v656 = vadd.f32 0.0, %v655
        %v657 = vpop.f32.mrf.mxu0
        %v658 = vadd.f32 0.0, %v657
        %659 = vdwg.mxu0
        %v660 = vadd.f32 %v572, %v574
        %v661 = vadd.f32 %v660, %v577
        %v662 = vadd.f32 %v661, %v579
        %v663 = vadd.f32 %v662, %v582
        %v664 = vadd.f32 %v663, %v584
        %v665 = vadd.f32 %v664, %v587
        %v666 = vadd.f32 %v665, %v589
        %v667 = vadd.f32 %v666, %v592
        %v668 = vadd.f32 %v667, %v594
        %v669 = vadd.f32 %v668, %v597
        %v670 = vadd.f32 %v669, %v599
        %v671 = vadd.f32 %v670, %v602
        %v672 = vadd.f32 %v671, %v604
        %v673 = vadd.f32 %v672, %v607
        %v674 = vadd.f32 %v673, %v609
        %v675 = vrot.slane %v674, 4
        %v676 = vadd.f32 %v674, %v675
        %v677 = vrot.slane %v676, 2
        %v678 = vadd.f32 %v676, %v677
        %v679 = vrot.slane %v678, 1
        %v680 = vadd.f32 %v678, %v679
        %v681 = vadd.f32 %v621, %v623
        %v682 = vadd.f32 %v681, %v626
        %v683 = vadd.f32 %v682, %v628
        %v684 = vadd.f32 %v683, %v631
        %v685 = vadd.f32 %v684, %v633
        %v686 = vadd.f32 %v685, %v636
        %v687 = vadd.f32 %v686, %v638
        %v688 = vadd.f32 %v687, %v641
        %v689 = vadd.f32 %v688, %v643
        %v690 = vadd.f32 %v689, %v646
        %v691 = vadd.f32 %v690, %v648
        %v692 = vadd.f32 %v691, %v651
        %v693 = vadd.f32 %v692, %v653
        %v694 = vadd.f32 %v693, %v656
        %v695 = vadd.f32 %v694, %v658
        %v696 = vrot.slane %v695, 4
        %v697 = vadd.f32 %v695, %v696
        %v698 = vrot.slane %v697, 2
        %v699 = vadd.f32 %v697, %v698
        %v700 = vrot.slane %v699, 1
        %v701 = vadd.f32 %v699, %v700
        %v702 = vmul.f32 %v572, %v572
        %v703 = vmul.f32 %v621, %v621
        %v704 = vmul.f32 %v574, %v574
        %v705 = vmul.f32 %v623, %v623
        %v706 = vmul.f32 %v577, %v577
        %v707 = vmul.f32 %v626, %v626
        %v708 = vmul.f32 %v579, %v579
        %v709 = vmul.f32 %v628, %v628
        %v710 = vmul.f32 %v582, %v582
        %v711 = vmul.f32 %v631, %v631
        %v712 = vmul.f32 %v584, %v584
        %v713 = vmul.f32 %v633, %v633
        %v714 = vmul.f32 %v587, %v587
        %v715 = vmul.f32 %v636, %v636
        %v716 = vmul.f32 %v589, %v589
        %v717 = vmul.f32 %v638, %v638
        %v718 = vmul.f32 %v592, %v592
        %v719 = vmul.f32 %v641, %v641
        %v720 = vmul.f32 %v594, %v594
        %v721 = vmul.f32 %v643, %v643
        %v722 = vmul.f32 %v597, %v597
        %v723 = vmul.f32 %v646, %v646
        %v724 = vmul.f32 %v599, %v599
        %v725 = vmul.f32 %v648, %v648
        %v726 = vmul.f32 %v602, %v602
        %v727 = vmul.f32 %v651, %v651
        %v728 = vmul.f32 %v604, %v604
        %v729 = vmul.f32 %v653, %v653
        %v730 = vmul.f32 %v607, %v607
        %v731 = vmul.f32 %v656, %v656
        %v732 = vmul.f32 %v609, %v609
        %v733 = vmul.f32 %v658, %v658
        %v734 = vadd.f32 %v702, %v704
        %v735 = vadd.f32 %v734, %v706
        %v736 = vadd.f32 %v735, %v708
        %v737 = vadd.f32 %v736, %v710
        %v738 = vadd.f32 %v737, %v712
        %v739 = vadd.f32 %v738, %v714
        %v740 = vadd.f32 %v739, %v716
        %v741 = vadd.f32 %v740, %v718
        %v742 = vadd.f32 %v741, %v720
        %v743 = vadd.f32 %v742, %v722
        %v744 = vadd.f32 %v743, %v724
        %v745 = vadd.f32 %v744, %v726
        %v746 = vadd.f32 %v745, %v728
        %v747 = vadd.f32 %v746, %v730
        %v748 = vadd.f32 %v747, %v732
        %v749 = vrot.slane %v748, 4
        %v750 = vadd.f32 %v748, %v749
        %v751 = vrot.slane %v750, 2
        %v752 = vadd.f32 %v750, %v751
        %v753 = vrot.slane %v752, 1
        %v754 = vadd.f32 %v752, %v753
        %v755 = vadd.f32 %v703, %v705
        %v756 = vadd.f32 %v755, %v707
        %v757 = vadd.f32 %v756, %v709
        %v758 = vadd.f32 %v757, %v711
        %v759 = vadd.f32 %v758, %v713
        %v760 = vadd.f32 %v759, %v715
        %v761 = vadd.f32 %v760, %v717
        %v762 = vadd.f32 %v761, %v719
        %v763 = vadd.f32 %v762, %v721
        %v764 = vadd.f32 %v763, %v723
        %v765 = vadd.f32 %v764, %v725
        %v766 = vadd.f32 %v765, %v727
        %v767 = vadd.f32 %v766, %v729
        %v768 = vadd.f32 %v767, %v731
        %v769 = vadd.f32 %v768, %v733
        %v770 = vrot.slane %v769, 4
        %v771 = vadd.f32 %v769, %v770
        %v772 = vrot.slane %v771, 2
        %v773 = vadd.f32 %v771, %v772
        %v774 = vrot.slane %v773, 1
        %v775 = vadd.f32 %v773, %v774
        %v776 = vmul.f32 %v680, 0.0078125
        %v777 = vmul.f32 %v701, 0.0078125
        %v778 = vmul.f32 %v754, 0.0078125
        %v779 = vmul.f32 %v775, 0.0078125
        %v780 = vmul.f32 %v776, %v776
        %v781 = vmul.f32 %v777, %v777
        %v782 = vsub.f32 %v778, %v780
        %v783 = vsub.f32 %v779, %v781
        %v784 = vadd.f32 %v782, 1e-05
        %v785 = vadd.f32 %v783, 1e-05
        %v786 = vrsqrt.pop %v784
        %v787 = vmul.f32 %v786, %v784
        %v788 = vmul.f32 %v787, %v786
        %v789 = vmul.f32 0.5, %v788
        %v790 = vsub.f32 1.5, %v789
        %v791 = vmul.f32 %v786, %v790
        %vm792 = vweird.f32 %v784
        %vm793 = vweird.f32 %v786
        %vm794 = vmor %vm792, %vm793
        %v795 = vsel %vm794, %v786, %v791
        %v796 = vrsqrt.pop %v785
        %v797 = vmul.f32 %v796, %v785
        %v798 = vmul.f32 %v797, %v796
        %v799 = vmul.f32 0.5, %v798
        %v800 = vsub.f32 1.5, %v799
        %v801 = vmul.f32 %v796, %v800
        %vm802 = vweird.f32 %v785
        %vm803 = vweird.f32 %v796
        %vm804 = vmor %vm802, %vm803
        %v805 = vsel %vm804, %v796, %v801
        %v806 = vld [vmem:[%s393] sm:$0x3]
        %v808 = vperm.slane %v806, 0
        %v809 = vperm.slane %v806, 1
        %v812 = vmul.f32 %v795, %v808
        %v813 = vmul.f32 %v805, %v809
        %v814 = vld [vmem:[%s398] sm:$0x3]
        %v815 = vmul.f32 %v776, %v812
        %v816 = vmul.f32 %v777, %v813
        %v819 = vrot.slane %v816, 7
        %vm820 = vcmask 1040384
        %v821 = vsel %vm820, %v815, %v819
        %v823 = vsub.f32 %v814, %v821
        %v824 = vperm.slane %v812, 0
        %v825 = vperm.slane %v813, 0
        %v826 = vmul.f32 %v572, %v824
        %v827 = vmul.f32 %v621, %v825
        %v828 = vmul.f32 %v574, %v824
        %v829 = vmul.f32 %v623, %v825
        %v830 = vmul.f32 %v577, %v824
        %v831 = vmul.f32 %v626, %v825
        %v832 = vmul.f32 %v579, %v824
        %v833 = vmul.f32 %v628, %v825
        %v834 = vmul.f32 %v582, %v824
        %v835 = vmul.f32 %v631, %v825
        %v836 = vmul.f32 %v584, %v824
        %v837 = vmul.f32 %v633, %v825
        %v838 = vmul.f32 %v587, %v824
        %v839 = vmul.f32 %v636, %v825
        %v840 = vmul.f32 %v589, %v824
        %v841 = vmul.f32 %v638, %v825
        %v842 = vmul.f32 %v592, %v824
        %v843 = vmul.f32 %v641, %v825
        %v844 = vmul.f32 %v594, %v824
        %v845 = vmul.f32 %v643, %v825
        %v846 = vmul.f32 %v597, %v824
        %v847 = vmul.f32 %v646, %v825
        %v848 = vmul.f32 %v599, %v824
        %v849 = vmul.f32 %v648, %v825
        %v850 = vmul.f32 %v602, %v824
        %v851 = vmul.f32 %v651, %v825
        %v852 = vmul.f32 %v604, %v824
        %v853 = vmul.f32 %v653, %v825
        %v854 = vmul.f32 %v607, %v824
        %v855 = vmul.f32 %v656, %v825
        %v856 = vmul.f32 %v609, %v824
        %v857 = vmul.f32 %v658, %v825
        %v859 = vperm.slane %v823, 0
        %v860 = vperm.slane %v823, 1
        %v863 = vadd.f32 %v826, %v859
        %v864 = vadd.f32 %v827, %v860
        %v865 = vadd.f32 %v828, %v859
        %v866 = vadd.f32 %v829, %v860
        %v867 = vadd.f32 %v830, %v859
        %v868 = vadd.f32 %v831, %v860
        %v869 = vadd.f32 %v832, %v859
        %v870 = vadd.f32 %v833, %v860
        %v871 = vadd.f32 %v834, %v859
        %v872 = vadd.f32 %v835, %v860
        %v873 = vadd.f32 %v836, %v859
        %v874 = vadd.f32 %v837, %v860
        %v875 = vadd.f32 %v838, %v859
        %v876 = vadd.f32 %v839, %v860
        %v877 = vadd.f32 %v840, %v859
        %v878 = vadd.f32 %v841, %v860
        %v879 = vadd.f32 %v842, %v859
        %v880 = vadd.f32 %v843, %v860
        %v881 = vadd.f32 %v844, %v859
        %v882 = vadd.f32 %v845, %v860
        %v883 = vadd.f32 %v846, %v859
        %v884 = vadd.f32 %v847, %v860
        %v885 = vadd.f32 %v848, %v859
        %v886 = vadd.f32 %v849, %v860
        %v887 = vadd.f32 %v850, %v859
        %v888 = vadd.f32 %v851, %v860
        %v889 = vadd.f32 %v852, %v859
        %v890 = vadd.f32 %v853, %v860
        %v891 = vadd.f32 %v854, %v859
        %v892 = vadd.f32 %v855, %v860
        %v893 = vadd.f32 %v856, %v859
        %v894 = vadd.f32 %v857, %v860
        %v895 = vld [vmem:[%s349] sm:$0xff]
        %v896 = vld [vmem:[%s349 + $0x8] sm:$0xff]
        %v897 = vld [vmem:[%s349 + $0x10] sm:$0xff]
        %v898 = vld [vmem:[%s349 + $0x18] sm:$0xff]
        %v899 = vld [vmem:[%s349 + $0x20] sm:$0xff]
        %v900 = vld [vmem:[%s349 + $0x28] sm:$0xff]
        %v901 = vld [vmem:[%s349 + $0x30] sm:$0xff]
        %v902 = vld [vmem:[%s349 + $0x38] sm:$0xff]
        %v903 = vld [vmem:[%s349 + $0x40] sm:$0xff]
        %v904 = vld [vmem:[%s349 + $0x48] sm:$0xff]
        %v905 = vld [vmem:[%s349 + $0x50] sm:$0xff]
        %v906 = vld [vmem:[%s349 + $0x58] sm:$0xff]
        %v907 = vld [vmem:[%s349 + $0x60] sm:$0xff]
        %v908 = vld [vmem:[%s349 + $0x68] sm:$0xff]
        %v909 = vld [vmem:[%s349 + $0x70] sm:$0xff]
        %v910 = vld [vmem:[%s349 + $0x78] sm:$0xff]
        %v911 = vld [vmem:[%s349 + $0x80] sm:$0xff]
        %v912 = vld [vmem:[%s349 + $0x88] sm:$0xff]
        %v913 = vld [vmem:[%s349 + $0x90] sm:$0xff]
        %v914 = vld [vmem:[%s349 + $0x98] sm:$0xff]
        %v915 = vld [vmem:[%s349 + $0xa0] sm:$0xff]
        %v916 = vld [vmem:[%s349 + $0xa8] sm:$0xff]
        %v917 = vld [vmem:[%s349 + $0xb0] sm:$0xff]
        %v918 = vld [vmem:[%s349 + $0xb8] sm:$0xff]
        %v919 = vld [vmem:[%s349 + $0xc0] sm:$0xff]
        %v920 = vld [vmem:[%s349 + $0xc8] sm:$0xff]
        %v921 = vld [vmem:[%s349 + $0xd0] sm:$0xff]
        %v922 = vld [vmem:[%s349 + $0xd8] sm:$0xff]
        %v923 = vld [vmem:[%s349 + $0xe0] sm:$0xff]
        %v924 = vld [vmem:[%s349 + $0xe8] sm:$0xff]
        %v925 = vld [vmem:[%s349 + $0xf0] sm:$0xff]
        %v926 = vld [vmem:[%s349 + $0xf8] sm:$0xff]
        %v927 = vadd.f32 %v863, %v895
        %v928 = vadd.f32 %v864, %v896
        %v929 = vadd.f32 %v865, %v897
        %v930 = vadd.f32 %v866, %v898
        %v931 = vadd.f32 %v867, %v899
        %v932 = vadd.f32 %v868, %v900
        %v933 = vadd.f32 %v869, %v901
        %v934 = vadd.f32 %v870, %v902
        %v935 = vadd.f32 %v871, %v903
        %v936 = vadd.f32 %v872, %v904
        %v937 = vadd.f32 %v873, %v905
        %v938 = vadd.f32 %v874, %v906
        %v939 = vadd.f32 %v875, %v907
        %v940 = vadd.f32 %v876, %v908
        %v941 = vadd.f32 %v877, %v909
        %v942 = vadd.f32 %v878, %v910
        %v943 = vadd.f32 %v879, %v911
        %v944 = vadd.f32 %v880, %v912
        %v945 = vadd.f32 %v881, %v913
        %v946 = vadd.f32 %v882, %v914
        %v947 = vadd.f32 %v883, %v915
        %v948 = vadd.f32 %v884, %v916
        %v949 = vadd.f32 %v885, %v917
        %v950 = vadd.f32 %v886, %v918
        %v951 = vadd.f32 %v887, %v919
        %v952 = vadd.f32 %v888, %v920
        %v953 = vadd.f32 %v889, %v921
        %v954 = vadd.f32 %v890, %v922
        %v955 = vadd.f32 %v891, %v923
        %v956 = vadd.f32 %v892, %v924
        %v957 = vadd.f32 %v893, %v925
        %v958 = vadd.f32 %v894, %v926
        %959 = vst [vmem:[%s388] sm:$0xff] %v927
        %960 = vst [vmem:[%s388 + $0x8] sm:$0xff] %v928
        %961 = vst [vmem:[%s388 + $0x10] sm:$0xff] %v929
        %962 = vst [vmem:[%s388 + $0x18] sm:$0xff] %v930
        %963 = vst [vmem:[%s388 + $0x20] sm:$0xff] %v931
        %964 = vst [vmem:[%s388 + $0x28] sm:$0xff] %v932
        %965 = vst [vmem:[%s388 + $0x30] sm:$0xff] %v933
        %966 = vst [vmem:[%s388 + $0x38] sm:$0xff] %v934
        %967 = vst [vmem:[%s388 + $0x40] sm:$0xff] %v935
        %968 = vst [vmem:[%s388 + $0x48] sm:$0xff] %v936
        %969 = vst [vmem:[%s388 + $0x50] sm:$0xff] %v937
        %970 = vst [vmem:[%s388 + $0x58] sm:$0xff] %v938
        %971 = vst [vmem:[%s388 + $0x60] sm:$0xff] %v939
        %972 = vst [vmem:[%s388 + $0x68] sm:$0xff] %v940
        %973 = vst [vmem:[%s388 + $0x70] sm:$0xff] %v941
        %974 = vst [vmem:[%s388 + $0x78] sm:$0xff] %v942
        %975 = vst [vmem:[%s388 + $0x80] sm:$0xff] %v943
        %976 = vst [vmem:[%s388 + $0x88] sm:$0xff] %v944
        %977 = vst [vmem:[%s388 + $0x90] sm:$0xff] %v945
        %978 = vst [vmem:[%s388 + $0x98] sm:$0xff] %v946
        %979 = vst [vmem:[%s388 + $0xa0] sm:$0xff] %v947
        %980 = vst [vmem:[%s388 + $0xa8] sm:$0xff] %v948
        %981 = vst [vmem:[%s388 + $0xb0] sm:$0xff] %v949
        %982 = vst [vmem:[%s388 + $0xb8] sm:$0xff] %v950
        %983 = vst [vmem:[%s388 + $0xc0] sm:$0xff] %v951
        %984 = vst [vmem:[%s388 + $0xc8] sm:$0xff] %v952
        %985 = vst [vmem:[%s388 + $0xd0] sm:$0xff] %v953
        %986 = vst [vmem:[%s388 + $0xd8] sm:$0xff] %v954
        %987 = vst [vmem:[%s388 + $0xe0] sm:$0xff] %v955
        %988 = vst [vmem:[%s388 + $0xe8] sm:$0xff] %v956
        %989 = vst [vmem:[%s388 + $0xf0] sm:$0xff] %v957
        %990 = vst [vmem:[%s388 + $0xf8] sm:$0xff] %v958
        %s991 = sand.u32 %s155, 1
        %s992 = scalar_lea.sflag [#allocation5], %s991
        %s993 = sand.u32 %s155, 1
        %s994 = smul.addr %s993, 256
        %s995 = scalar_lea.vmem [#allocation6], %s994
        // Predicated region
        $region83: #{tpu_custom_call.1} parent=73 // pred_check
          %p996 = pneg %p165
        $region84: #{tpu_custom_call.1} parent=73 // pred_check_branch
          %998 = sbr.rel (%p996) target = $region86
        $region85: #{tpu_custom_call.1} parent=73 // pred_region
          %s999 = smul.u32 2, %s22
          %1001 = vsyncadd %s992, 0
          %s1002 = smul.addr %s999, 8
          %s1003 = scalar_lea.hbm %s5, %s1002
          %s1004 = sshll.u32 %s995, 4
          %s1005 = int_to_ptr.vmem [resolvable:$true] %s1004
          %s1006 = sshll.u32 %s1003, 4
          %s1007 = int_to_ptr.hbm [resolvable:$true] %s1006
          %1012 = dma.vmem_to_hbm [thread:$0]  %s1005, 4096, %s1007, %s992, 256, 512, 16
        $region86: #{tpu_custom_call.1} parent=73 // pred_fallthru
          _
      $region74: #{tpu_custom_call.1} parent=5 // pred_fallthru
        _
      %p1013 = scmp.le.s32.totalorder 2, %s17
      // Predicated region
      $region87: #{tpu_custom_call.1} parent=5 // pred_check
        %p1014 = pneg %p1013
      $region88: #{tpu_custom_call.1} parent=5 // pred_check_branch
        %1016 = sbr.rel (%p1014) target = $region90
      $region89: #{tpu_custom_call.1} parent=5 // pred_region
        %s1017 = ssub.s32 %s17, 2
        // Predicated region
        $region91: #{tpu_custom_call.1} parent=89 // pred_check
          %p1018 = pneg %p171
        $region92: #{tpu_custom_call.1} parent=89 // pred_check_branch
          %1020 = sbr.rel (%p1018) target = $region94
        $region93: #{tpu_custom_call.1} parent=89 // pred_region
          %s1021 = sand.u32 %s156, 1
          %s1022 = scalar_lea.sflag [#allocation5], %s1021
          %s1023 = sand.u32 %s156, 1
          %s1024 = smul.addr %s1023, 256
          %s1025 = scalar_lea.vmem [#allocation6], %s1024
          %1027 = dma.done %s1022, 4096
        $region94: #{tpu_custom_call.1} parent=89 // pred_fallthru
          _
      $region90: #{tpu_custom_call.1} parent=5 // pred_fallthru
        _
    $region6: #{tpu_custom_call.1} parent=1 // loop_footer
      %s21 = sadd.s32 1, %s17
    $region7: #{tpu_custom_call.1} parent=1 // loop_footer_branch
      %16 = sbr.rel target = $region3
    $region8: #{tpu_custom_call.1} parent=1 // loop_exit
      _
    %1028 = vsyncpa [#allocation4], 1
    %s1029 = scalar_lea.sflag [#allocation4], 1
    %1030 = vsyncpa %s1029, 1
    %1031 = vsyncpa [#allocation5], 1
    %s1032 = scalar_lea.sflag [#allocation5], 1
    %1033 = vsyncpa %s1032, 1

// kernel: tpu_custom_call.1
$region0: #{tpu_custom_call.1}
  #allocation0 [shape = 'u32[]', space=smem, size = 0x4, offset = 0x4, fixed_abs, tag = 'smem constant byte address 0x4 - core index']
  #allocation1 [shape = 'u32[72,128]{1,0:T(1,128)}', space=vmem, size = 0x9000, scoped, tag = 'internal scratch']
  %s0 = inlined_call_operand.vmem [shape: bf16[128,128], index: 0, kind: input, shape index: {}]
  %s1 = inlined_call_operand.vmem [shape: bf16[128,512], index: 1, kind: input, shape index: {}]
  %s2 = inlined_call_operand.vmem [shape: f32[1,512], index: 2, kind: input, shape index: {}]
  %s3 = inlined_call_operand.vmem [shape: f32[1,512], index: 3, kind: input, shape index: {}]
  %s4 = inlined_call_operand.hbm [shape: f32[128,512], index: 4, kind: input, shape index: {}, may-alias: {4,5}]
  %s5 = inlined_call_operand.hbm [shape: f32[128,512], index: 5, kind: output, shape index: {}, may-alias: {4,5}]
  %s6 = sld [smem:[#allocation0]]
  $region95: #{tpu_custom_call.1} parent=0
    _
  %s8 = ssub.s32 1, %s6
  %s9 = scalar_select 0, %s8, %s6
  $region1: #{tpu_custom_call.1} parent=0
    #allocation2 [shape = 'u8[131072]{0}', space=vmem, size = 0x20000, scoped, tag = 'input window, operand 1']
    #allocation3 [shape = 'u8[262144]{0}', space=vmem, size = 0x40000, scoped, tag = 'input window, operand 4']
    #allocation4 [shape = 's32[2]{0}', space=sflag, size = 0x8, scoped, tag = 'scoped memory for tpu_custom_call.1']
    #allocation5 [shape = 's32[2]{0}', space=sflag, size = 0x8, scoped, tag = 'scoped memory for tpu_custom_call.1']
    #allocation6 [shape = 'u8[262144]{0}', space=vmem, size = 0x40000, scoped, tag = 'output window, operand 0']
    %10 = vsyncpa [#allocation4], 0
    %s11 = scalar_lea.sflag [#allocation4], 1
    %12 = vsyncpa %s11, 0
    %13 = vsyncpa [#allocation5], 0
    %s14 = scalar_lea.sflag [#allocation5], 1
    %15 = vsyncpa %s14, 0
    loop: start=0, step=1, limit=4
    $region2: #{tpu_custom_call.1} parent=1 // loop_pre_header
      _
    $region3: #{tpu_custom_call.1} parent=1 // loop_header
      %s17 = sphi 0, %s21
      %p18 = scmp.ge.s32.totalorder %s17, 4
      %s25 = sphi 0, %s25
      %s27 = sphi 0, %s25
      %s28 = sphi 0, %s27
      %s42 = sphi 0, %s28
      %s48 = sphi 0, %s50
      %s51 = sphi 0, %s48
      %s52 = sphi 0, %s51
      %s68 = sphi 0, %s52
      %s74 = sphi 0, %s76
      %s77 = sphi 0, %s74
      %s78 = sphi 0, %s77
      %s94 = sphi 0, %s78
      %s100 = sphi 0, %s102
      %s103 = sphi 0, %s100
      %s104 = sphi 0, %s103
      %s120 = sphi 0, %s104
      %s126 = sphi 0, %s128
      %s129 = sphi 0, %s126
      %s130 = sphi 0, %s129
      %s146 = sphi 0, %s130
      %s152 = sphi 0, %s154
      %s155 = sphi 0, %s152
      %s156 = sphi 0, %s155
      %s172 = sphi 0, %s156
    $region4: #{tpu_custom_call.1} parent=1 // loop_header_branch
      %20 = sbr.rel (%p18) target = $region8
    $region5: #{tpu_custom_call.1} parent=1 // loop_body
      %s22 = ssub.s32 %s17, 1
      %s23 = ssub.s32 %s17, 2
      %s24 = sadd.s32 %s17, 1
      %s26 = sadd.s32 %s25, 1
      %p29 = scmp.eq.s32.totalorder %s17, 1
      %p30 = scmp.ne.s32.totalorder %s25, %s27
      %p31 = scmp.eq.s32.totalorder %s17, 0
      %p32 = por %p30, %p31
      %p33 = scmp.ne.s32.totalorder %s25, %s27
      %p34 = scmp.eq.s32.totalorder %s22, 1
      %p35 = por %p33, %p34
      %p36 = scmp.ne.s32.totalorder %s27, %s28
      %p37 = scmp.eq.s32.totalorder %s22, 0
      %p38 = por %p36, %p37
      %p39 = scmp.ne.s32.totalorder %s27, %s28
      %p40 = scmp.eq.s32.totalorder %s23, 1
      %p41 = por %p39, %p40
      %p43 = scmp.ne.s32.totalorder %s28, %s42
      %p44 = scmp.eq.s32.totalorder %s23, 0
      %p45 = por %p43, %p44
      %s46 = ssub.s32 %s17, %s24
      %p47 = scmp.eq.s32.totalorder %s46, 0
      %s49 = sadd.s32 %s48, 1
      %s50 = scalar_select %p47, %s48, %s49
      %p53 = pneg %p47
      %p54 = scmp.eq.s32.totalorder %s17, 1
      %p55 = por %p53, %p54
      %p56 = scmp.ne.s32.totalorder %s48, %s51
      %p57 = scmp.eq.s32.totalorder %s17, 0
      %p58 = por %p56, %p57
      %p59 = scmp.ne.s32.totalorder %s48, %s51
      %p60 = scmp.eq.s32.totalorder %s22, 1
      %p61 = por %p59, %p60
      %p62 = scmp.ne.s32.totalorder %s51, %s52
      %p63 = scmp.eq.s32.totalorder %s22, 0
      %p64 = por %p62, %p63
      %p65 = scmp.ne.s32.totalorder %s51, %s52
      %p66 = scmp.eq.s32.totalorder %s23, 1
      %p67 = por %p65, %p66
      %p69 = scmp.ne.s32.totalorder %s52, %s68
      %p70 = scmp.eq.s32.totalorder %s23, 0
      %p71 = por %p69, %p70
      %s72 = ssub.s32 %s17, %s24
      %p73 = scmp.eq.s32.totalorder %s72, 0
      %s75 = sadd.s32 %s74, 1
      %s76 = scalar_select %p73, %s74, %s75
      %p79 = pneg %p73
      %p80 = scmp.eq.s32.totalorder %s17, 1
      %p81 = por %p79, %p80
      %p82 = scmp.ne.s32.totalorder %s74, %s77
      %p83 = scmp.eq.s32.totalorder %s17, 0
      %p84 = por %p82, %p83
      %p85 = scmp.ne.s32.totalorder %s74, %s77
      %p86 = scmp.eq.s32.totalorder %s22, 1
      %p87 = por %p85, %p86
      %p88 = scmp.ne.s32.totalorder %s77, %s78
      %p89 = scmp.eq.s32.totalorder %s22, 0
      %p90 = por %p88, %p89
      %p91 = scmp.ne.s32.totalorder %s77, %s78
      %p92 = scmp.eq.s32.totalorder %s23, 1
      %p93 = por %p91, %p92
      %p95 = scmp.ne.s32.totalorder %s78, %s94
      %p96 = scmp.eq.s32.totalorder %s23, 0
      %p97 = por %p95, %p96
      %s98 = ssub.s32 %s17, %s24
      %p99 = scmp.eq.s32.totalorder %s98, 0
      %s101 = sadd.s32 %s100, 1
      %s102 = scalar_select %p99, %s100, %s101
      %p105 = pneg %p99
      %p106 = scmp.eq.s32.totalorder %s17, 1
      %p107 = por %p105, %p106
      %p108 = scmp.ne.s32.totalorder %s100, %s103
      %p109 = scmp.eq.s32.totalorder %s17, 0
      %p110 = por %p108, %p109
      %p111 = scmp.ne.s32.totalorder %s100, %s103
      %p112 = scmp.eq.s32.totalorder %s22, 1
      %p113 = por %p111, %p112
      %p114 = scmp.ne.s32.totalorder %s103, %s104
      %p115 = scmp.eq.s32.totalorder %s22, 0
      %p116 = por %p114, %p115
      %p117 = scmp.ne.s32.totalorder %s103, %s104
      %p118 = scmp.eq.s32.totalorder %s23, 1
      %p119 = por %p117, %p118
      %p121 = scmp.ne.s32.totalorder %s104, %s120
      %p122 = scmp.eq.s32.totalorder %s23, 0
      %p123 = por %p121, %p122
      %s124 = ssub.s32 %s17, %s24
      %p125 = scmp.eq.s32.totalorder %s124, 0
      %s127 = sadd.s32 %s126, 1
      %s128 = scalar_select %p125, %s126, %s127
      %p131 = pneg %p125
      %p132 = scmp.eq.s32.totalorder %s17, 1
      %p133 = por %p131, %p132
      %p134 = scmp.ne.s32.totalorder %s126, %s129
      %p135 = scmp.eq.s32.totalorder %s17, 0
      %p136 = por %p134, %p135
      %p137 = scmp.ne.s32.totalorder %s126, %s129
      %p138 = scmp.eq.s32.totalorder %s22, 1
      %p139 = por %p137, %p138
      %p140 = scmp.ne.s32.totalorder %s129, %s130
      %p141 = scmp.eq.s32.totalorder %s22, 0
      %p142 = por %p140, %p141
      %p143 = scmp.ne.s32.totalorder %s129, %s130
      %p144 = scmp.eq.s32.totalorder %s23, 1
      %p145 = por %p143, %p144
      %p147 = scmp.ne.s32.totalorder %s130, %s146
      %p148 = scmp.eq.s32.totalorder %s23, 0
      %p149 = por %p147, %p148
      %s150 = ssub.s32 %s17, %s24
      %p151 = scmp.eq.s32.totalorder %s150, 0
      %s153 = sadd.s32 %s152, 1
      %s154 = scalar_select %p151, %s152, %s153
      %p157 = pneg %p151
      %p158 = scmp.eq.s32.totalorder %s17, 1
      %p159 = por %p157, %p158
      %p160 = scmp.ne.s32.totalorder %s152, %s155
      %p161 = scmp.eq.s32.totalorder %s17, 0
      %p162 = por %p160, %p161
      %p163 = scmp.ne.s32.totalorder %s152, %s155
      %p164 = scmp.eq.s32.totalorder %s22, 1
      %p165 = por %p163, %p164
      %p166 = scmp.ne.s32.totalorder %s155, %s156
      %p167 = scmp.eq.s32.totalorder %s22, 0
      %p168 = por %p166, %p167
      %p169 = scmp.ne.s32.totalorder %s155, %s156
      %p170 = scmp.eq.s32.totalorder %s23, 1
      %p171 = por %p169, %p170
      %p173 = scmp.ne.s32.totalorder %s156, %s172
      %p174 = scmp.eq.s32.totalorder %s23, 0
      %p175 = por %p173, %p174
      %p176 = scmp.le.s32.totalorder 1, %s17
      %p177 = scmp.lt.s32.totalorder %s17, 3
      %p178 = pnand %p176, %p177
      %p179 = pneg %p178
      // Predicated region
      $region9: #{tpu_custom_call.1} parent=5 // pred_check
        _
      $region10: #{tpu_custom_call.1} parent=5 // pred_check_branch
        %181 = sbr.rel (%p178) target = $region12
      $region11: #{tpu_custom_call.1} parent=5 // pred_region
        %s182 = ssub.s32 %s17, 1
        // Predicated region
        $region13: #{tpu_custom_call.1} parent=11 // pred_check
          %p183 = pneg %p38
        $region14: #{tpu_custom_call.1} parent=11 // pred_check_branch
          %185 = sbr.rel (%p183) target = $region16
        $region15: #{tpu_custom_call.1} parent=11 // pred_region
          _
        $region16: #{tpu_custom_call.1} parent=11 // pred_fallthru
          _
      $region12: #{tpu_custom_call.1} parent=5 // pred_fallthru
        _
      %p186 = scmp.lt.s32.totalorder %s17, 2
      // Predicated region
      $region17: #{tpu_custom_call.1} parent=5 // pred_check
        %p187 = pneg %p186
      $region18: #{tpu_custom_call.1} parent=5 // pred_check_branch
        %189 = sbr.rel (%p187) target = $region20
      $region19: #{tpu_custom_call.1} parent=5 // pred_region
        // Predicated region
        $region21: #{tpu_custom_call.1} parent=19 // pred_check
          %p190 = pneg %p58
        $region22: #{tpu_custom_call.1} parent=19 // pred_check_branch
          %192 = sbr.rel (%p190) target = $region24
        $region23: #{tpu_custom_call.1} parent=19 // pred_region
          %s193 = sand.u32 %s48, 1
          %s194 = sand.u32 %s48, 1
          %s195 = smul.addr %s194, 128
          %s196 = scalar_lea.vmem [#allocation2], %s195
          %s197 = smul.u32 2, %s17
          %s198 = smul.addr %s197, 4
          %s199 = scalar_lea.vmem %s1, %s198
          // Predicated region
          $region25: #{tpu_custom_call.1} parent=23 // pred_check
            _
          $region26: #{tpu_custom_call.1} parent=23 // pred_check_branch
            %201 = sbr.rel (0) target = $region28
          $region27: #{tpu_custom_call.1} parent=23 // pred_region
            // Predicated region
            $region29: #{tpu_custom_call.1} parent=27 // pred_check
              _
            $region30: #{tpu_custom_call.1} parent=27 // pred_check_branch
              %203 = sbr.rel (0) target = $region32
            $region31: #{tpu_custom_call.1} parent=27 // pred_region
              // Predicated region
              $region44: #{tpu_custom_call.1} parent=31 // pred_check
                _
              $region45: #{tpu_custom_call.1} parent=31 // pred_check_branch
                %249 = sbr.rel (0) target = $region47
              $region46: #{tpu_custom_call.1} parent=31 // pred_region
                loop: start=0, step=1, limit=1
                $region48: #{tpu_custom_call.1} parent=46 // loop_pre_header
                  _
                $region49: #{tpu_custom_call.1} parent=46 // loop_header
                  %s251 = sphi 0, %s255
                  %p252 = scmp.ge.s32.totalorder %s251, 1
                  %s256 = sphi %s199, %s199
                  %s257 = sphi %s196, %s196
                $region50: #{tpu_custom_call.1} parent=46 // loop_header_branch
                  %254 = sbr.rel (%p252) target = $region54
                $region51: #{tpu_custom_call.1} parent=46 // loop_body
                  %v258 = vld [vmem:[%s256] sm:$0xff]
                  %259 = vst [vmem:[%s257] sm:$0xff] %v258
                  %v260 = vld [vmem:[%s256 + $0x10] sm:$0xff]
                  %261 = vst [vmem:[%s257 + $0x8] sm:$0xff] %v260
                  %v262 = vld [vmem:[%s256 + $0x20] sm:$0xff]
                  %263 = vst [vmem:[%s257 + $0x10] sm:$0xff] %v262
                  %v264 = vld [vmem:[%s256 + $0x30] sm:$0xff]
                  %265 = vst [vmem:[%s257 + $0x18] sm:$0xff] %v264
                  %v266 = vld [vmem:[%s256 + $0x40] sm:$0xff]
                  %267 = vst [vmem:[%s257 + $0x20] sm:$0xff] %v266
                  %v268 = vld [vmem:[%s256 + $0x50] sm:$0xff]
                  %269 = vst [vmem:[%s257 + $0x28] sm:$0xff] %v268
                  %v270 = vld [vmem:[%s256 + $0x60] sm:$0xff]
                  %271 = vst [vmem:[%s257 + $0x30] sm:$0xff] %v270
                  %v272 = vld [vmem:[%s256 + $0x70] sm:$0xff]
                  %273 = vst [vmem:[%s257 + $0x38] sm:$0xff] %v272
                  %v274 = vld [vmem:[%s256 + $0x80] sm:$0xff]
                  %275 = vst [vmem:[%s257 + $0x40] sm:$0xff] %v274
                  %v276 = vld [vmem:[%s256 + $0x90] sm:$0xff]
                  %277 = vst [vmem:[%s257 + $0x48] sm:$0xff] %v276
                  %v278 = vld [vmem:[%s256 + $0xa0] sm:$0xff]
                  %279 = vst [vmem:[%s257 + $0x50] sm:$0xff] %v278
                  %v280 = vld [vmem:[%s256 + $0xb0] sm:$0xff]
                  %281 = vst [vmem:[%s257 + $0x58] sm:$0xff] %v280
                  %v282 = vld [vmem:[%s256 + $0xc0] sm:$0xff]
                  %283 = vst [vmem:[%s257 + $0x60] sm:$0xff] %v282
                  %v284 = vld [vmem:[%s256 + $0xd0] sm:$0xff]
                  %285 = vst [vmem:[%s257 + $0x68] sm:$0xff] %v284
                  %v286 = vld [vmem:[%s256 + $0xe0] sm:$0xff]
                  %287 = vst [vmem:[%s257 + $0x70] sm:$0xff] %v286
                  %v288 = vld [vmem:[%s256 + $0xf0] sm:$0xff]
                  %289 = vst [vmem:[%s257 + $0x78] sm:$0xff] %v288
                $region52: #{tpu_custom_call.1} parent=46 // loop_footer
                  %s255 = sadd.s32 1, %s251
                $region53: #{tpu_custom_call.1} parent=46 // loop_footer_branch
                  %250 = sbr.rel target = $region49
                $region54: #{tpu_custom_call.1} parent=46 // loop_exit
                  _
              $region47: #{tpu_custom_call.1} parent=31 // pred_fallthru
                _
              // Predicated region
              $region55: #{tpu_custom_call.1} parent=31 // pred_check
                _
              $region56: #{tpu_custom_call.1} parent=31 // pred_check_branch
                %291 = sbr.rel target = $region58
              $region57: #{tpu_custom_call.1} parent=31 // pred_region
                _
              $region58: #{tpu_custom_call.1} parent=31 // pred_fallthru
                _
            $region32: #{tpu_custom_call.1} parent=27 // pred_fallthru
              _
            // Predicated region
            $region33: #{tpu_custom_call.1} parent=27 // pred_check
              _
            $region34: #{tpu_custom_call.1} parent=27 // pred_check_branch
              %205 = sbr.rel target = $region36
            $region35: #{tpu_custom_call.1} parent=27 // pred_region
              %s207 = ssub.s32 256, 1
              loop: start=0, step=1, limit=1
              $region37: #{tpu_custom_call.1} parent=35 // loop_pre_header
                _
              $region38: #{tpu_custom_call.1} parent=35 // loop_header
                %s209 = sphi 0, %s213
                %p210 = scmp.ge.s32.totalorder %s209, 1
                %s214 = sphi %s199, %s199
                %s215 = sphi %s196, %s196
              $region39: #{tpu_custom_call.1} parent=35 // loop_header_branch
                %212 = sbr.rel (%p210) target = $region43
              $region40: #{tpu_custom_call.1} parent=35 // loop_body
                %v216 = vld [vmem:[%s214] sm:%s207]
                %217 = vst [vmem:[%s215] sm:%s207] %v216
                %v218 = vld [vmem:[%s214 + $0x10] sm:%s207]
                %219 = vst [vmem:[%s215 + $0x8] sm:%s207] %v218
                %v220 = vld [vmem:[%s214 + $0x20] sm:%s207]
                %221 = vst [vmem:[%s215 + $0x10] sm:%s207] %v220
                %v222 = vld [vmem:[%s214 + $0x30] sm:%s207]
                %223 = vst [vmem:[%s215 + $0x18] sm:%s207] %v222
                %v224 = vld [vmem:[%s214 + $0x40] sm:%s207]
                %225 = vst [vmem:[%s215 + $0x20] sm:%s207] %v224
                %v226 = vld [vmem:[%s214 + $0x50] sm:%s207]
                %227 = vst [vmem:[%s215 + $0x28] sm:%s207] %v226
                %v228 = vld [vmem:[%s214 + $0x60] sm:%s207]
                %229 = vst [vmem:[%s215 + $0x30] sm:%s207] %v228
                %v230 = vld [vmem:[%s214 + $0x70] sm:%s207]
                %231 = vst [vmem:[%s215 + $0x38] sm:%s207] %v230
                %v232 = vld [vmem:[%s214 + $0x80] sm:%s207]
                %233 = vst [vmem:[%s215 + $0x40] sm:%s207] %v232
                %v234 = vld [vmem:[%s214 + $0x90] sm:%s207]
                %235 = vst [vmem:[%s215 + $0x48] sm:%s207] %v234
                %v236 = vld [vmem:[%s214 + $0xa0] sm:%s207]
                %237 = vst [vmem:[%s215 + $0x50] sm:%s207] %v236
                %v238 = vld [vmem:[%s214 + $0xb0] sm:%s207]
                %239 = vst [vmem:[%s215 + $0x58] sm:%s207] %v238
                %v240 = vld [vmem:[%s214 + $0xc0] sm:%s207]
                %241 = vst [vmem:[%s215 + $0x60] sm:%s207] %v240
                %v242 = vld [vmem:[%s214 + $0xd0] sm:%s207]
                %243 = vst [vmem:[%s215 + $0x68] sm:%s207] %v242
                %v244 = vld [vmem:[%s214 + $0xe0] sm:%s207]
                %245 = vst [vmem:[%s215 + $0x70] sm:%s207] %v244
                %v246 = vld [vmem:[%s214 + $0xf0] sm:%s207]
                %247 = vst [vmem:[%s215 + $0x78] sm:%s207] %v246
              $region41: #{tpu_custom_call.1} parent=35 // loop_footer
                %s213 = sadd.s32 1, %s209
              $region42: #{tpu_custom_call.1} parent=35 // loop_footer_branch
                %208 = sbr.rel target = $region38
              $region43: #{tpu_custom_call.1} parent=35 // loop_exit
                _
            $region36: #{tpu_custom_call.1} parent=27 // pred_fallthru
              _
          $region28: #{tpu_custom_call.1} parent=23 // pred_fallthru
            _
          %292 = vnop
        $region24: #{tpu_custom_call.1} parent=19 // pred_fallthru
          _
        // Predicated region
        $region59: #{tpu_custom_call.1} parent=19 // pred_check
          %p293 = pneg %p84
        $region60: #{tpu_custom_call.1} parent=19 // pred_check_branch
          %295 = sbr.rel (%p293) target = $region62
        $region61: #{tpu_custom_call.1} parent=19 // pred_region
          %s296 = smul.u32 2, %s17
          %p297 = scmp.lt.s32.totalorder %s296, 3
          %s298 = scalar_select %p297, %s296, 3
          %s299 = scalar_lea.vmem %s2, %s298
          %s300 = smul.u32 2, %s17
        $region62: #{tpu_custom_call.1} parent=19 // pred_fallthru
          _
        // Predicated region
        $region63: #{tpu_custom_call.1} parent=19 // pred_check
          %p301 = pneg %p110
        $region64: #{tpu_custom_call.1} parent=19 // pred_check_branch
          %303 = sbr.rel (%p301) target = $region66
        $region65: #{tpu_custom_call.1} parent=19 // pred_region
          %s304 = smul.u32 2, %s17
          %p305 = scmp.lt.s32.totalorder %s304, 3
          %s306 = scalar_select %p305, %s304, 3
          %s307 = scalar_lea.vmem %s3, %s306
          %s308 = smul.u32 2, %s17
        $region66: #{tpu_custom_call.1} parent=19 // pred_fallthru
          _
        // Predicated region
        $region67: #{tpu_custom_call.1} parent=19 // pred_check
          %p309 = pneg %p136
        $region68: #{tpu_custom_call.1} parent=19 // pred_check_branch
          %311 = sbr.rel (%p309) target = $region70
        $region69: #{tpu_custom_call.1} parent=19 // pred_region
          %s312 = sand.u32 %s126, 1
          %s313 = scalar_lea.sflag [#allocation4], %s312
          %s314 = sand.u32 %s126, 1
          %s315 = smul.addr %s314, 256
          %s316 = scalar_lea.vmem [#allocation3], %s315
          %s317 = smul.u32 2, %s17
          %319 = vsyncadd %s313, 0
          %s320 = smul.addr %s317, 8
          %s321 = scalar_lea.hbm %s4, %s320
          %s322 = sshll.u32 %s321, 4
          %s323 = int_to_ptr.hbm [resolvable:$true] %s322
          %s324 = sshll.u32 %s316, 4
          %s325 = int_to_ptr.vmem [resolvable:$true] %s324
          %330 = dma.hbm_to_vmem [thread:$0]  %s323, 4096, %s325, %s313, 512, 256, 16
        $region70: #{tpu_custom_call.1} parent=19 // pred_fallthru
          _
      $region20: #{tpu_custom_call.1} parent=5 // pred_fallthru
        _
      %p331 = scmp.le.s32.totalorder 1, %s17
      %p332 = scmp.lt.s32.totalorder %s17, 3
      %p333 = pnand %p331, %p332
      %p334 = pneg %p333
      // Predicated region
      $region71: #{tpu_custom_call.1} parent=5 // pred_check
        _
      $region72: #{tpu_custom_call.1} parent=5 // pred_check_branch
        %336 = sbr.rel (%p333) target = $region74
      $region73: #{tpu_custom_call.1} parent=5 // pred_region
        %s337 = ssub.s32 %s17, 1
        %s338 = sand.u32 %s51, 1
        %s339 = sand.u32 %s51, 1
        %s340 = smul.addr %s339, 128
        %s341 = scalar_lea.vmem [#allocation2], %s340
        // Predicated region
        $region75: #{tpu_custom_call.1} parent=73 // pred_check
          %p342 = pneg %p64
        $region76: #{tpu_custom_call.1} parent=73 // pred_check_branch
          %344 = sbr.rel (%p342) target = $region78
        $region77: #{tpu_custom_call.1} parent=73 // pred_region
          _
        $region78: #{tpu_custom_call.1} parent=73 // pred_fallthru
          _
        %s345 = sand.u32 %s129, 1
        %s346 = scalar_lea.sflag [#allocation4], %s345
        %s347 = sand.u32 %s129, 1
        %s348 = smul.addr %s347, 256
        %s349 = scalar_lea.vmem [#allocation3], %s348
        // Predicated region
        $region79: #{tpu_custom_call.1} parent=73 // pred_check
          %p350 = pneg %p142
        $region80: #{tpu_custom_call.1} parent=73 // pred_check_branch
          %352 = sbr.rel (%p350) target = $region82
        $region81: #{tpu_custom_call.1} parent=73 // pred_region
          %354 = dma.done %s346, 4096
        $region82: #{tpu_custom_call.1} parent=73 // pred_fallthru
          _
        %p355 = pneg %p38
        %p356 = pneg %p35
        %s357 = sand.u32 %s51, 1
        %s358 = sand.u32 %s51, 1
        %s359 = smul.addr %s358, 128
        %s360 = scalar_lea.vmem [#allocation2], %s359
        %p361 = pneg %p64
        %p362 = pneg %p61
        %s363 = smul.u32 2, %s22
        %p364 = scmp.lt.s32.totalorder %s363, 3
        %s365 = scalar_select %p364, %s363, 3
        %s366 = scalar_lea.vmem %s2, %s365
        %p367 = pneg %p90
        %p368 = pneg %p87
        %s369 = smul.u32 2, %s22
        %p370 = scmp.lt.s32.totalorder %s369, 3
        %s371 = scalar_select %p370, %s369, 3
        %s372 = scalar_lea.vmem %s3, %s371
        %p373 = pneg %p116
        %p374 = pneg %p113
        %s375 = sand.u32 %s129, 1
        %s376 = scalar_lea.sflag [#allocation4], %s375
        %s377 = sand.u32 %s129, 1
        %s378 = smul.addr %s377, 256
        %s379 = scalar_lea.vmem [#allocation3], %s378
        %p380 = pneg %p142
        %p381 = pneg %p139
        %p382 = pneg %p168
        %p383 = pneg %p165
        %s384 = sand.u32 %s155, 1
        %s385 = scalar_lea.sflag [#allocation5], %s384
        %s386 = sand.u32 %s155, 1
        %s387 = smul.addr %s386, 256
        %s388 = scalar_lea.vmem [#allocation6], %s387
        %s389 = smul.u32 2, %s22
        %s390 = smul.u32 2, %s22
        %p391 = scmp.lt.s32.totalorder %s390, 3
        %s392 = scalar_select %p391, %s390, 3
        %s393 = scalar_lea.vmem %s2, %s392
        %s394 = smul.u32 2, %s22
        %s395 = smul.u32 2, %s22
        %p396 = scmp.lt.s32.totalorder %s395, 3
        %s397 = scalar_select %p396, %s395, 3
        %s398 = scalar_lea.vmem %s3, %s397
        %s399 = smul.u32 2, %s22
        %s400 = smul.u32 2, %s22
        %s401 = smul.u32 2, %s22
        %v402 = vld [vmem:[%s0] sm:$0xf]
        %v403 = vld [vmem:[%s0 + $0x4] sm:$0xf]
        %v404 = vld [vmem:[%s0 + $0x8] sm:$0xf]
        %v405 = vld [vmem:[%s0 + $0xc] sm:$0xf]
        %v406 = vld [vmem:[%s0 + $0x10] sm:$0xf]
        %v407 = vld [vmem:[%s0 + $0x14] sm:$0xf]
        %v408 = vld [vmem:[%s0 + $0x18] sm:$0xf]
        %v409 = vld [vmem:[%s0 + $0x1c] sm:$0xf]
        %v410 = vld [vmem:[%s0 + $0x20] sm:$0xf]
        %v411 = vld [vmem:[%s0 + $0x24] sm:$0xf]
        %v412 = vld [vmem:[%s0 + $0x28] sm:$0xf]
        %v413 = vld [vmem:[%s0 + $0x2c] sm:$0xf]
        %v414 = vld [vmem:[%s0 + $0x30] sm:$0xf]
        %v415 = vld [vmem:[%s0 + $0x34] sm:$0xf]
        %v416 = vld [vmem:[%s0 + $0x38] sm:$0xf]
        %v417 = vld [vmem:[%s0 + $0x3c] sm:$0xf]
        %v418 = vld [vmem:[%s341] sm:$0xff]
        %v419 = vld [vmem:[%s341 + $0x8] sm:$0xff]
        %v420 = vld [vmem:[%s341 + $0x10] sm:$0xff]
        %v421 = vld [vmem:[%s341 + $0x18] sm:$0xff]
        %v422 = vld [vmem:[%s341 + $0x20] sm:$0xff]
        %v423 = vld [vmem:[%s341 + $0x28] sm:$0xff]
        %v424 = vld [vmem:[%s341 + $0x30] sm:$0xff]
        %v425 = vld [vmem:[%s341 + $0x38] sm:$0xff]
        %v426 = vld [vmem:[%s341 + $0x40] sm:$0xff]
        %v427 = vld [vmem:[%s341 + $0x48] sm:$0xff]
        %v428 = vld [vmem:[%s341 + $0x50] sm:$0xff]
        %v429 = vld [vmem:[%s341 + $0x58] sm:$0xff]
        %v430 = vld [vmem:[%s341 + $0x60] sm:$0xff]
        %v431 = vld [vmem:[%s341 + $0x68] sm:$0xff]
        %v432 = vld [vmem:[%s341 + $0x70] sm:$0xff]
        %v433 = vld [vmem:[%s341 + $0x78] sm:$0xff]
        %v450 = vunpack.c.l.b16 %v402
        %v451 = vunpack.c.l.b16 %v403
        %v452 = vunpack.c.l.b16 %v404
        %v453 = vunpack.c.l.b16 %v405
        %v454 = vunpack.c.l.b16 %v406
        %v455 = vunpack.c.l.b16 %v407
        %v456 = vunpack.c.l.b16 %v408
        %v457 = vunpack.c.l.b16 %v409
        %v458 = vunpack.c.l.b16 %v410
        %v459 = vunpack.c.l.b16 %v411
        %v460 = vunpack.c.l.b16 %v412
        %v461 = vunpack.c.l.b16 %v413
        %v462 = vunpack.c.l.b16 %v414
        %v463 = vunpack.c.l.b16 %v415
        %v464 = vunpack.c.l.b16 %v416
        %v465 = vunpack.c.l.b16 %v417
        %v466 = vpack.c.b16 %v451, %v450
        %v467 = vpack.c.b16 %v453, %v452
        %v468 = vpack.c.b16 %v455, %v454
        %v469 = vpack.c.b16 %v457, %v456
        %v470 = vpack.c.b16 %v459, %v458
        %v471 = vpack.c.b16 %v461, %v460
        %v472 = vpack.c.b16 %v463, %v462
        %v473 = vpack.c.b16 %v465, %v464
        %v498 = vunpack.c.l.b16 %v418
        %v499 = vunpack.c.h.b16 %v418
        %v500 = vunpack.c.l.b16 %v419
        %v501 = vunpack.c.h.b16 %v419
        %v502 = vunpack.c.l.b16 %v420
        %v503 = vunpack.c.h.b16 %v420
        %v504 = vunpack.c.l.b16 %v421
        %v505 = vunpack.c.h.b16 %v421
        %v506 = vunpack.c.l.b16 %v422
        %v507 = vunpack.c.h.b16 %v422
        %v508 = vunpack.c.l.b16 %v423
        %v509 = vunpack.c.h.b16 %v423
        %v510 = vunpack.c.l.b16 %v424
        %v511 = vunpack.c.h.b16 %v424
        %v512 = vunpack.c.l.b16 %v425
        %v513 = vunpack.c.h.b16 %v425
        %v514 = vunpack.c.l.b16 %v426
        %v515 = vunpack.c.h.b16 %v426
        %v516 = vunpack.c.l.b16 %v427
        %v517 = vunpack.c.h.b16 %v427
        %v518 = vunpack.c.l.b16 %v428
        %v519 = vunpack.c.h.b16 %v428
        %v520 = vunpack.c.l.b16 %v429
        %v521 = vunpack.c.h.b16 %v429
        %v522 = vunpack.c.l.b16 %v430
        %v523 = vunpack.c.h.b16 %v430
        %v524 = vunpack.c.l.b16 %v431
        %v525 = vunpack.c.h.b16 %v431
        %v526 = vunpack.c.l.b16 %v432
        %v527 = vunpack.c.h.b16 %v432
        %v528 = vunpack.c.l.b16 %v433
        %v529 = vunpack.c.h.b16 %v433
        %v530 = vpack.c.b16 %v500, %v498
        %v531 = vpack.c.b16 %v501, %v499
        %v532 = vpack.c.b16 %v504, %v502
        %v533 = vpack.c.b16 %v505, %v503
        %v534 = vpack.c.b16 %v508, %v506
        %v535 = vpack.c.b16 %v509, %v507
        %v536 = vpack.c.b16 %v512, %v510
        %v537 = vpack.c.b16 %v513, %v511
        %v538 = vpack.c.b16 %v516, %v514
        %v539 = vpack.c.b16 %v517, %v515
        %v540 = vpack.c.b16 %v520, %v518
        %v541 = vpack.c.b16 %v521, %v519
        %v542 = vpack.c.b16 %v524, %v522
        %v543 = vpack.c.b16 %v525, %v523
        %v544 = vpack.c.b16 %v528, %v526
        %v545 = vpack.c.b16 %v529, %v527
        %562 = vmatpush.bf16.msra.mxu0 %v544
        %563 = vmatpush.bf16.msra.mxu0 %v542
        %564 = vmatpush.bf16.msra.mxu0 %v540
        %565 = vmatpush.bf16.msra.mxu0 %v538
        %566 = vmatpush.bf16.msra.mxu0 %v536
        %567 = vmatpush.bf16.msra.mxu0 %v534
        %568 = vmatpush.bf16.msra.mxu0 %v532
        %569 = vmatpush.bf16.msra.mxu0 %v530
        %570 = vmatmul.bf16.gmra.mxu0 %v466
        %v571 = vpop.f32.mrf.mxu0
        %v572 = vadd.f32 0.0, %v571
        %v573 = vpop.f32.mrf.mxu0
        %v574 = vadd.f32 0.0, %v573
        %575 = vmatmul.bf16.gmra.mxu0 %v467
        %v576 = vpop.f32.mrf.mxu0
        %v577 = vadd.f32 0.0, %v576
        %v578 = vpop.f32.mrf.mxu0
        %v579 = vadd.f32 0.0, %v578
        %580 = vmatmul.bf16.gmra.mxu0 %v468
        %v581 = vpop.f32.mrf.mxu0
        %v582 = vadd.f32 0.0, %v581
        %v583 = vpop.f32.mrf.mxu0
        %v584 = vadd.f32 0.0, %v583
        %585 = vmatmul.bf16.gmra.mxu0 %v469
        %v586 = vpop.f32.mrf.mxu0
        %v587 = vadd.f32 0.0, %v586
        %v588 = vpop.f32.mrf.mxu0
        %v589 = vadd.f32 0.0, %v588
        %590 = vmatmul.bf16.gmra.mxu0 %v470
        %v591 = vpop.f32.mrf.mxu0
        %v592 = vadd.f32 0.0, %v591
        %v593 = vpop.f32.mrf.mxu0
        %v594 = vadd.f32 0.0, %v593
        %595 = vmatmul.bf16.gmra.mxu0 %v471
        %v596 = vpop.f32.mrf.mxu0
        %v597 = vadd.f32 0.0, %v596
        %v598 = vpop.f32.mrf.mxu0
        %v599 = vadd.f32 0.0, %v598
        %600 = vmatmul.bf16.gmra.mxu0 %v472
        %v601 = vpop.f32.mrf.mxu0
        %v602 = vadd.f32 0.0, %v601
        %v603 = vpop.f32.mrf.mxu0
        %v604 = vadd.f32 0.0, %v603
        %605 = vmatmul.bf16.gmra.mxu0 %v473
        %v606 = vpop.f32.mrf.mxu0
        %v607 = vadd.f32 0.0, %v606
        %v608 = vpop.f32.mrf.mxu0
        %v609 = vadd.f32 0.0, %v608
        %610 = vdwg.mxu0
        %611 = vmatpush.bf16.msra.mxu0 %v545
        %612 = vmatpush.bf16.msra.mxu0 %v543
        %613 = vmatpush.bf16.msra.mxu0 %v541
        %614 = vmatpush.bf16.msra.mxu0 %v539
        %615 = vmatpush.bf16.msra.mxu0 %v537
        %616 = vmatpush.bf16.msra.mxu0 %v535
        %617 = vmatpush.bf16.msra.mxu0 %v533
        %618 = vmatpush.bf16.msra.mxu0 %v531
        %619 = vmatmul.bf16.gmra.mxu0 %v466
        %v620 = vpop.f32.mrf.mxu0
        %v621 = vadd.f32 0.0, %v620
        %v622 = vpop.f32.mrf.mxu0
        %v623 = vadd.f32 0.0, %v622
        %624 = vmatmul.bf16.gmra.mxu0 %v467
        %v625 = vpop.f32.mrf.mxu0
        %v626 = vadd.f32 0.0, %v625
        %v627 = vpop.f32.mrf.mxu0
        %v628 = vadd.f32 0.0, %v627
        %629 = vmatmul.bf16.gmra.mxu0 %v468
        %v630 = vpop.f32.mrf.mxu0
        %v631 = vadd.f32 0.0, %v630
        %v632 = vpop.f32.mrf.mxu0
        %v633 = vadd.f32 0.0, %v632
        %634 = vmatmul.bf16.gmra.mxu0 %v469
        %v635 = vpop.f32.mrf.mxu0
        %v636 = vadd.f32 0.0, %v635
        %v637 = vpop.f32.mrf.mxu0
        %v638 = vadd.f32 0.0, %v637
        %639 = vmatmul.bf16.gmra.mxu0 %v470
        %v640 = vpop.f32.mrf.mxu0
        %v641 = vadd.f32 0.0, %v640
        %v642 = vpop.f32.mrf.mxu0
        %v643 = vadd.f32 0.0, %v642
        %644 = vmatmul.bf16.gmra.mxu0 %v471
        %v645 = vpop.f32.mrf.mxu0
        %v646 = vadd.f32 0.0, %v645
        %v647 = vpop.f32.mrf.mxu0
        %v648 = vadd.f32 0.0, %v647
        %649 = vmatmul.bf16.gmra.mxu0 %v472
        %v650 = vpop.f32.mrf.mxu0
        %v651 = vadd.f32 0.0, %v650
        %v652 = vpop.f32.mrf.mxu0
        %v653 = vadd.f32 0.0, %v652
        %654 = vmatmul.bf16.gmra.mxu0 %v473
        %v655 = vpop.f32.mrf.mxu0
        %v656 = vadd.f32 0.0, %v655
        %v657 = vpop.f32.mrf.mxu0
        %v658 = vadd.f32 0.0, %v657
        %659 = vdwg.mxu0
        %v660 = vadd.f32 %v572, %v574
        %v661 = vadd.f32 %v660, %v577
        %v662 = vadd.f32 %v661, %v579
        %v663 = vadd.f32 %v662, %v582
        %v664 = vadd.f32 %v663, %v584
        %v665 = vadd.f32 %v664, %v587
        %v666 = vadd.f32 %v665, %v589
        %v667 = vadd.f32 %v666, %v592
        %v668 = vadd.f32 %v667, %v594
        %v669 = vadd.f32 %v668, %v597
        %v670 = vadd.f32 %v669, %v599
        %v671 = vadd.f32 %v670, %v602
        %v672 = vadd.f32 %v671, %v604
        %v673 = vadd.f32 %v672, %v607
        %v674 = vadd.f32 %v673, %v609
        %v675 = vrot.slane %v674, 4
        %v676 = vadd.f32 %v674, %v675
        %v677 = vrot.slane %v676, 2
        %v678 = vadd.f32 %v676, %v677
        %v679 = vrot.slane %v678, 1
        %v680 = vadd.f32 %v678, %v679
        %v681 = vadd.f32 %v621, %v623
        %v682 = vadd.f32 %v681, %v626
        %v683 = vadd.f32 %v682, %v628
        %v684 = vadd.f32 %v683, %v631
        %v685 = vadd.f32 %v684, %v633
        %v686 = vadd.f32 %v685, %v636
        %v687 = vadd.f32 %v686, %v638
        %v688 = vadd.f32 %v687, %v641
        %v689 = vadd.f32 %v688, %v643
        %v690 = vadd.f32 %v689, %v646
        %v691 = vadd.f32 %v690, %v648
        %v692 = vadd.f32 %v691, %v651
        %v693 = vadd.f32 %v692, %v653
        %v694 = vadd.f32 %v693, %v656
        %v695 = vadd.f32 %v694, %v658
        %v696 = vrot.slane %v695, 4
        %v697 = vadd.f32 %v695, %v696
        %v698 = vrot.slane %v697, 2
        %v699 = vadd.f32 %v697, %v698
        %v700 = vrot.slane %v699, 1
        %v701 = vadd.f32 %v699, %v700
        %v702 = vmul.f32 %v572, %v572
        %v703 = vmul.f32 %v621, %v621
        %v704 = vmul.f32 %v574, %v574
        %v705 = vmul.f32 %v623, %v623
        %v706 = vmul.f32 %v577, %v577
        %v707 = vmul.f32 %v626, %v626
        %v708 = vmul.f32 %v579, %v579
        %v709 = vmul.f32 %v628, %v628
        %v710 = vmul.f32 %v582, %v582
        %v711 = vmul.f32 %v631, %v631
        %v712 = vmul.f32 %v584, %v584
        %v713 = vmul.f32 %v633, %v633
        %v714 = vmul.f32 %v587, %v587
        %v715 = vmul.f32 %v636, %v636
        %v716 = vmul.f32 %v589, %v589
        %v717 = vmul.f32 %v638, %v638
        %v718 = vmul.f32 %v592, %v592
        %v719 = vmul.f32 %v641, %v641
        %v720 = vmul.f32 %v594, %v594
        %v721 = vmul.f32 %v643, %v643
        %v722 = vmul.f32 %v597, %v597
        %v723 = vmul.f32 %v646, %v646
        %v724 = vmul.f32 %v599, %v599
        %v725 = vmul.f32 %v648, %v648
        %v726 = vmul.f32 %v602, %v602
        %v727 = vmul.f32 %v651, %v651
        %v728 = vmul.f32 %v604, %v604
        %v729 = vmul.f32 %v653, %v653
        %v730 = vmul.f32 %v607, %v607
        %v731 = vmul.f32 %v656, %v656
        %v732 = vmul.f32 %v609, %v609
        %v733 = vmul.f32 %v658, %v658
        %v734 = vadd.f32 %v702, %v704
        %v735 = vadd.f32 %v734, %v706
        %v736 = vadd.f32 %v735, %v708
        %v737 = vadd.f32 %v736, %v710
        %v738 = vadd.f32 %v737, %v712
        %v739 = vadd.f32 %v738, %v714
        %v740 = vadd.f32 %v739, %v716
        %v741 = vadd.f32 %v740, %v718
        %v742 = vadd.f32 %v741, %v720
        %v743 = vadd.f32 %v742, %v722
        %v744 = vadd.f32 %v743, %v724
        %v745 = vadd.f32 %v744, %v726
        %v746 = vadd.f32 %v745, %v728
        %v747 = vadd.f32 %v746, %v730
        %v748 = vadd.f32 %v747, %v732
        %v749 = vrot.slane %v748, 4
        %v750 = vadd.f32 %v748, %v749
        %v751 = vrot.slane %v750, 2
        %v752 = vadd.f32 %v750, %v751
        %v753 = vrot.slane %v752, 1
        %v754 = vadd.f32 %v752, %v753
        %v755 = vadd.f32 %v703, %v705
        %v756 = vadd.f32 %v755, %v707
        %v757 = vadd.f32 %v756, %v709
        %v758 = vadd.f32 %v757, %v711
        %v759 = vadd.f32 %v758, %v713
        %v760 = vadd.f32 %v759, %v715
        %v761 = vadd.f32 %v760, %v717
        %v762 = vadd.f32 %v761, %v719
        %v763 = vadd.f32 %v762, %v721
        %v764 = vadd.f32 %v763, %v723
        %v765 = vadd.f32 %v764, %v725
        %v766 = vadd.f32 %v765, %v727
        %v767 = vadd.f32 %v766, %v729
        %v768 = vadd.f32 %v767, %v731
        %v769 = vadd.f32 %v768, %v733
        %v770 = vrot.slane %v769, 4
        %v771 = vadd.f32 %v769, %v770
        %v772 = vrot.slane %v771, 2
        %v773 = vadd.f32 %v771, %v772
        %v774 = vrot.slane %v773, 1
        %v775 = vadd.f32 %v773, %v774
        %v776 = vmul.f32 %v680, 0.0078125
        %v777 = vmul.f32 %v701, 0.0078125
        %v778 = vmul.f32 %v754, 0.0078125
        %v779 = vmul.f32 %v775, 0.0078125
        %v780 = vmul.f32 %v776, %v776
        %v781 = vmul.f32 %v777, %v777
        %v782 = vsub.f32 %v778, %v780
        %v783 = vsub.f32 %v779, %v781
        %v784 = vadd.f32 %v782, 1e-05
        %v785 = vadd.f32 %v783, 1e-05
        %v786 = vrsqrt.pop %v784
        %v787 = vmul.f32 %v786, %v784
        %v788 = vmul.f32 %v787, %v786
        %v789 = vmul.f32 0.5, %v788
        %v790 = vsub.f32 1.5, %v789
        %v791 = vmul.f32 %v786, %v790
        %vm792 = vweird.f32 %v784
        %vm793 = vweird.f32 %v786
        %vm794 = vmor %vm792, %vm793
        %v795 = vsel %vm794, %v786, %v791
        %v796 = vrsqrt.pop %v785
        %v797 = vmul.f32 %v796, %v785
        %v798 = vmul.f32 %v797, %v796
        %v799 = vmul.f32 0.5, %v798
        %v800 = vsub.f32 1.5, %v799
        %v801 = vmul.f32 %v796, %v800
        %vm802 = vweird.f32 %v785
        %vm803 = vweird.f32 %v796
        %vm804 = vmor %vm802, %vm803
        %v805 = vsel %vm804, %v796, %v801
        %v806 = vld [vmem:[%s393] sm:$0x3]
        %v808 = vperm.slane %v806, 0
        %v809 = vperm.slane %v806, 1
        %v812 = vmul.f32 %v795, %v808
        %v813 = vmul.f32 %v805, %v809
        %v814 = vld [vmem:[%s398] sm:$0x3]
        %v815 = vmul.f32 %v776, %v812
        %v816 = vmul.f32 %v777, %v813
        %v819 = vrot.slane %v816, 7
        %vm820 = vcmask 1040384
        %v821 = vsel %vm820, %v815, %v819
        %v823 = vsub.f32 %v814, %v821
        %v824 = vperm.slane %v812, 0
        %v825 = vperm.slane %v813, 0
        %v826 = vmul.f32 %v572, %v824
        %v827 = vmul.f32 %v621, %v825
        %v828 = vmul.f32 %v574, %v824
        %v829 = vmul.f32 %v623, %v825
        %v830 = vmul.f32 %v577, %v824
        %v831 = vmul.f32 %v626, %v825
        %v832 = vmul.f32 %v579, %v824
        %v833 = vmul.f32 %v628, %v825
        %v834 = vmul.f32 %v582, %v824
        %v835 = vmul.f32 %v631, %v825
        %v836 = vmul.f32 %v584, %v824
        %v837 = vmul.f32 %v633, %v825
        %v838 = vmul.f32 %v587, %v824
        %v839 = vmul.f32 %v636, %v825
        %v840 = vmul.f32 %v589, %v824
        %v841 = vmul.f32 %v638, %v825
        %v842 = vmul.f32 %v592, %v824
        %v843 = vmul.f32 %v641, %v825
        %v844 = vmul.f32 %v594, %v824
        %v845 = vmul.f32 %v643, %v825
        %v846 = vmul.f32 %v597, %v824
        %v847 = vmul.f32 %v646, %v825
        %v848 = vmul.f32 %v599, %v824
        %v849 = vmul.f32 %v648, %v825
        %v850 = vmul.f32 %v602, %v824
        %v851 = vmul.f32 %v651, %v825
        %v852 = vmul.f32 %v604, %v824
        %v853 = vmul.f32 %v653, %v825
        %v854 = vmul.f32 %v607, %v824
        %v855 = vmul.f32 %v656, %v825
        %v856 = vmul.f32 %v609, %v824
        %v857 = vmul.f32 %v658, %v825
        %v859 = vperm.slane %v823, 0
        %v860 = vperm.slane %v823, 1
        %v863 = vadd.f32 %v826, %v859
        %v864 = vadd.f32 %v827, %v860
        %v865 = vadd.f32 %v828, %v859
        %v866 = vadd.f32 %v829, %v860
        %v867 = vadd.f32 %v830, %v859
        %v868 = vadd.f32 %v831, %v860
        %v869 = vadd.f32 %v832, %v859
        %v870 = vadd.f32 %v833, %v860
        %v871 = vadd.f32 %v834, %v859
        %v872 = vadd.f32 %v835, %v860
        %v873 = vadd.f32 %v836, %v859
        %v874 = vadd.f32 %v837, %v860
        %v875 = vadd.f32 %v838, %v859
        %v876 = vadd.f32 %v839, %v860
        %v877 = vadd.f32 %v840, %v859
        %v878 = vadd.f32 %v841, %v860
        %v879 = vadd.f32 %v842, %v859
        %v880 = vadd.f32 %v843, %v860
        %v881 = vadd.f32 %v844, %v859
        %v882 = vadd.f32 %v845, %v860
        %v883 = vadd.f32 %v846, %v859
        %v884 = vadd.f32 %v847, %v860
        %v885 = vadd.f32 %v848, %v859
        %v886 = vadd.f32 %v849, %v860
        %v887 = vadd.f32 %v850, %v859
        %v888 = vadd.f32 %v851, %v860
        %v889 = vadd.f32 %v852, %v859
        %v890 = vadd.f32 %v853, %v860
        %v891 = vadd.f32 %v854, %v859
        %v892 = vadd.f32 %v855, %v860
        %v893 = vadd.f32 %v856, %v859
        %v894 = vadd.f32 %v857, %v860
        %v895 = vld [vmem:[%s349] sm:$0xff]
        %v896 = vld [vmem:[%s349 + $0x8] sm:$0xff]
        %v897 = vld [vmem:[%s349 + $0x10] sm:$0xff]
        %v898 = vld [vmem:[%s349 + $0x18] sm:$0xff]
        %v899 = vld [vmem:[%s349 + $0x20] sm:$0xff]
        %v900 = vld [vmem:[%s349 + $0x28] sm:$0xff]
        %v901 = vld [vmem:[%s349 + $0x30] sm:$0xff]
        %v902 = vld [vmem:[%s349 + $0x38] sm:$0xff]
        %v903 = vld [vmem:[%s349 + $0x40] sm:$0xff]
        %v904 = vld [vmem:[%s349 + $0x48] sm:$0xff]
        %v905 = vld [vmem:[%s349 + $0x50] sm:$0xff]
        %v906 = vld [vmem:[%s349 + $0x58] sm:$0xff]
        %v907 = vld [vmem:[%s349 + $0x60] sm:$0xff]
        %v908 = vld [vmem:[%s349 + $0x68] sm:$0xff]
        %v909 = vld [vmem:[%s349 + $0x70] sm:$0xff]
        %v910 = vld [vmem:[%s349 + $0x78] sm:$0xff]
        %v911 = vld [vmem:[%s349 + $0x80] sm:$0xff]
        %v912 = vld [vmem:[%s349 + $0x88] sm:$0xff]
        %v913 = vld [vmem:[%s349 + $0x90] sm:$0xff]
        %v914 = vld [vmem:[%s349 + $0x98] sm:$0xff]
        %v915 = vld [vmem:[%s349 + $0xa0] sm:$0xff]
        %v916 = vld [vmem:[%s349 + $0xa8] sm:$0xff]
        %v917 = vld [vmem:[%s349 + $0xb0] sm:$0xff]
        %v918 = vld [vmem:[%s349 + $0xb8] sm:$0xff]
        %v919 = vld [vmem:[%s349 + $0xc0] sm:$0xff]
        %v920 = vld [vmem:[%s349 + $0xc8] sm:$0xff]
        %v921 = vld [vmem:[%s349 + $0xd0] sm:$0xff]
        %v922 = vld [vmem:[%s349 + $0xd8] sm:$0xff]
        %v923 = vld [vmem:[%s349 + $0xe0] sm:$0xff]
        %v924 = vld [vmem:[%s349 + $0xe8] sm:$0xff]
        %v925 = vld [vmem:[%s349 + $0xf0] sm:$0xff]
        %v926 = vld [vmem:[%s349 + $0xf8] sm:$0xff]
        %v927 = vadd.f32 %v863, %v895
        %v928 = vadd.f32 %v864, %v896
        %v929 = vadd.f32 %v865, %v897
        %v930 = vadd.f32 %v866, %v898
        %v931 = vadd.f32 %v867, %v899
        %v932 = vadd.f32 %v868, %v900
        %v933 = vadd.f32 %v869, %v901
        %v934 = vadd.f32 %v870, %v902
        %v935 = vadd.f32 %v871, %v903
        %v936 = vadd.f32 %v872, %v904
        %v937 = vadd.f32 %v873, %v905
        %v938 = vadd.f32 %v874, %v906
        %v939 = vadd.f32 %v875, %v907
        %v940 = vadd.f32 %v876, %v908
        %v941 = vadd.f32 %v877, %v909
        %v942 = vadd.f32 %v878, %v910
        %v943 = vadd.f32 %v879, %v911
        %v944 = vadd.f32 %v880, %v912
        %v945 = vadd.f32 %v881, %v913
        %v946 = vadd.f32 %v882, %v914
        %v947 = vadd.f32 %v883, %v915
        %v948 = vadd.f32 %v884, %v916
        %v949 = vadd.f32 %v885, %v917
        %v950 = vadd.f32 %v886, %v918
        %v951 = vadd.f32 %v887, %v919
        %v952 = vadd.f32 %v888, %v920
        %v953 = vadd.f32 %v889, %v921
        %v954 = vadd.f32 %v890, %v922
        %v955 = vadd.f32 %v891, %v923
        %v956 = vadd.f32 %v892, %v924
        %v957 = vadd.f32 %v893, %v925
        %v958 = vadd.f32 %v894, %v926
        %959 = vst [vmem:[%s388] sm:$0xff] %v927
        %960 = vst [vmem:[%s388 + $0x8] sm:$0xff] %v928
        %961 = vst [vmem:[%s388 + $0x10] sm:$0xff] %v929
        %962 = vst [vmem:[%s388 + $0x18] sm:$0xff] %v930
        %963 = vst [vmem:[%s388 + $0x20] sm:$0xff] %v931
        %964 = vst [vmem:[%s388 + $0x28] sm:$0xff] %v932
        %965 = vst [vmem:[%s388 + $0x30] sm:$0xff] %v933
        %966 = vst [vmem:[%s388 + $0x38] sm:$0xff] %v934
        %967 = vst [vmem:[%s388 + $0x40] sm:$0xff] %v935
        %968 = vst [vmem:[%s388 + $0x48] sm:$0xff] %v936
        %969 = vst [vmem:[%s388 + $0x50] sm:$0xff] %v937
        %970 = vst [vmem:[%s388 + $0x58] sm:$0xff] %v938
        %971 = vst [vmem:[%s388 + $0x60] sm:$0xff] %v939
        %972 = vst [vmem:[%s388 + $0x68] sm:$0xff] %v940
        %973 = vst [vmem:[%s388 + $0x70] sm:$0xff] %v941
        %974 = vst [vmem:[%s388 + $0x78] sm:$0xff] %v942
        %975 = vst [vmem:[%s388 + $0x80] sm:$0xff] %v943
        %976 = vst [vmem:[%s388 + $0x88] sm:$0xff] %v944
        %977 = vst [vmem:[%s388 + $0x90] sm:$0xff] %v945
        %978 = vst [vmem:[%s388 + $0x98] sm:$0xff] %v946
        %979 = vst [vmem:[%s388 + $0xa0] sm:$0xff] %v947
        %980 = vst [vmem:[%s388 + $0xa8] sm:$0xff] %v948
        %981 = vst [vmem:[%s388 + $0xb0] sm:$0xff] %v949
        %982 = vst [vmem:[%s388 + $0xb8] sm:$0xff] %v950
        %983 = vst [vmem:[%s388 + $0xc0] sm:$0xff] %v951
        %984 = vst [vmem:[%s388 + $0xc8] sm:$0xff] %v952
        %985 = vst [vmem:[%s388 + $0xd0] sm:$0xff] %v953
        %986 = vst [vmem:[%s388 + $0xd8] sm:$0xff] %v954
        %987 = vst [vmem:[%s388 + $0xe0] sm:$0xff] %v955
        %988 = vst [vmem:[%s388 + $0xe8] sm:$0xff] %v956
        %989 = vst [vmem:[%s388 + $0xf0] sm:$0xff] %v957
        %990 = vst [vmem:[%s388 + $0xf8] sm:$0xff] %v958
        %s991 = sand.u32 %s155, 1
        %s992 = scalar_lea.sflag [#allocation5], %s991
        %s993 = sand.u32 %s155, 1
        %s994 = smul.addr %s993, 256
        %s995 = scalar_lea.vmem [#allocation6], %s994
        // Predicated region
        $region83: #{tpu_custom_call.1} parent=73 // pred_check
          %p996 = pneg %p165
        $region84: #{tpu_custom_call.1} parent=73 // pred_check_branch
          %998 = sbr.rel (%p996) target = $region86
        $region85: #{tpu_custom_call.1} parent=73 // pred_region
          %s999 = smul.u32 2, %s22
          %1001 = vsyncadd %s992, 0
          %s1002 = smul.addr %s999, 8
          %s1003 = scalar_lea.hbm %s5, %s1002
          %s1004 = sshll.u32 %s995, 4
          %s1005 = int_to_ptr.vmem [resolvable:$true] %s1004
          %s1006 = sshll.u32 %s1003, 4
          %s1007 = int_to_ptr.hbm [resolvable:$true] %s1006
          %1012 = dma.vmem_to_hbm [thread:$0]  %s1005, 4096, %s1007, %s992, 256, 512, 16
        $region86: #{tpu_custom_call.1} parent=73 // pred_fallthru
          _
      $region74: #{tpu_custom_call.1} parent=5 // pred_fallthru
        _
      %p1013 = scmp.le.s32.totalorder 2, %s17
      // Predicated region
      $region87: #{tpu_custom_call.1} parent=5 // pred_check
        %p1014 = pneg %p1013
      $region88: #{tpu_custom_call.1} parent=5 // pred_check_branch
        %1016 = sbr.rel (%p1014) target = $region90
      $region89: #{tpu_custom_call.1} parent=5 // pred_region
        %s1017 = ssub.s32 %s17, 2
        // Predicated region
        $region91: #{tpu_custom_call.1} parent=89 // pred_check
          %p1018 = pneg %p171
        $region92: #{tpu_custom_call.1} parent=89 // pred_check_branch
          %1020 = sbr.rel (%p1018) target = $region94
        $region93: #{tpu_custom_call.1} parent=89 // pred_region
          %s1021 = sand.u32 %s156, 1
          %s1022 = scalar_lea.sflag [#allocation5], %s1021
          %s1023 = sand.u32 %s156, 1
          %s1024 = smul.addr %s1023, 256
          %s1025 = scalar_lea.vmem [#allocation6], %s1024
          %1027 = dma.done %s1022, 4096
        $region94: #{tpu_custom_call.1} parent=89 // pred_fallthru
          _
      $region90: #{tpu_custom_call.1} parent=5 // pred_fallthru
        _
    $region6: #{tpu_custom_call.1} parent=1 // loop_footer
      %s21 = sadd.s32 1, %s17
    $region7: #{tpu_custom_call.1} parent=1 // loop_footer_branch
      %16 = sbr.rel target = $region3
    $region8: #{tpu_custom_call.1} parent=1 // loop_exit
      _
    %1028 = vsyncpa [#allocation4], 1
    %s1029 = scalar_lea.sflag [#allocation4], 1
    %1030 = vsyncpa %s1029, 1
    %1031 = vsyncpa [#allocation5], 1
    %s1032 = scalar_lea.sflag [#allocation5], 1
    %1033 = vsyncpa %s1032, 1

</llo_original>
